<compile_context>
chip_gen: v5e
topology: v5e:2x2
jax: 0.10.0
libtpu: 0.0.40
codegen_flags: <defaults>
</compile_context>

<pallas_src>
import numpy as np
import jax
import jax.numpy as jnp
from jax.experimental import pallas as pl
from jax.experimental.pallas import tpu as pltpu


def _erf(x):
    # Abramowitz & Stegun 7.1.26 rational approximation (max abs err ~1.5e-7)
    # -> effectively f32-exact, matches torch.nn.GELU() (exact erf GELU).
    a1, a2, a3, a4, a5 = 0.254829592, -0.284496736, 1.421413741, -1.453152027, 1.061405429
    p = 0.3275911
    sgn = jnp.where(x >= 0.0, 1.0, -1.0)
    ax = jnp.abs(x)
    t = 1.0 / (1.0 + p * ax)
    poly = ((((a5 * t + a4) * t + a3) * t + a2) * t + a1) * t
    return sgn * (1.0 - poly * jnp.exp(-ax * ax))


def _tree_sum(vals):
    vals = list(vals)
    while len(vals) > 1:
        nxt = [vals[i] + vals[i + 1] for i in range(0, len(vals) - 1, 2)]
        if len(vals) % 2:
            nxt.append(vals[-1])
        vals = nxt
    return vals[0]


def make_dpcnn_kernel(Bt, T1, T2, C, E):
    """Kernel for one batch tile of Bt rows (all shapes static / closed over)."""
    N1 = Bt * T1          # rows after first pool (conv working length)
    N2 = Bt * T2          # rows after second pool

    def kernel(emb_even_ref, emb_odd_ref, wr_ref, br_ref,
               wc1_ref, bc1_ref, wc2_ref, bc2_ref,
               wq1_ref, bq1_ref, wq2_ref, bq2_ref,
               wl1_ref, bl1_ref, wl2_ref, bl2_ref,
               out_ref, conv_scr, pool_scr):
        f32 = jnp.float32
        mm_dtype = wr_ref.dtype                       # f32 or bf16 MXU operands
        relu = lambda v: jnp.maximum(v, 0.0)

        # ---- batch-segment boundary masks, generated in-kernel (no HBM inputs).
        row = jax.lax.broadcasted_iota(jnp.int32, (N1, C), 0)
        if (T1 & (T1 - 1)) == 0:                      # power-of-two fast path
            tpos = row & (T1 - 1)
        else:
            tpos = row % T1
        m_first = jnp.where(tpos == 0, 0.0, 1.0)      # zero at segment starts
        m_last = jnp.where(tpos == T1 - 1, 0.0, 1.0)  # zero at segment ends

        # ---- region conv (kernel (1,E)) + ReLU + MaxPool((2,1),2), fused:
        # pool(relu(conv(all))) == max(relu(conv(even)), relu(conv(odd))).
        br = br_ref[...]
        xe = jnp.dot(emb_even_ref[...], wr_ref[...], preferred_element_type=f32) + br
        xo = jnp.dot(emb_odd_ref[...], wr_ref[...], preferred_element_type=f32) + br
        x = jnp.maximum(relu(xe), relu(xo))                       # (N1, C) f32

        def conv3(y, w_ref, b_ref):
            # Conv2d(C->C, kernel (3,1), padding (1,0)): shifts via sublane roll
            # (positive shifts only); segment boundaries / wrap rows masked to 0.
            ym1 = (pltpu.roll(y, shift=1, axis=0) * m_first).astype(mm_dtype)
            yp1 = (pltpu.roll(y, shift=N1 - 1, axis=0) * m_last).astype(mm_dtype)
            yc = y.astype(mm_dtype)
            d0 = jnp.dot(ym1, w_ref[0], preferred_element_type=f32)
            d1 = jnp.dot(yc, w_ref[1], preferred_element_type=f32)
            d2 = jnp.dot(yp1, w_ref[2], preferred_element_type=f32)
            return (d0 + d1) + (d2 + b_ref[...])                  # tree-summed
            # TODO(synk): when C % 128 == 0, fuse the 3 taps into one
            # (N1, 3C) @ (3C, C) lane-concatenated matmul.

        x_ = relu(conv3(x, wc1_ref, bc1_ref))
        x_ = relu(conv3(x_, wc2_ref, bc2_ref))
        x = x + x_
        x_ = relu(conv3(x, wq1_ref, bq1_ref))
        x_ = relu(conv3(x_, wq2_ref, bq2_ref))
        x = x + x_                                                # (N1, C)

        # ---- second MaxPool((2,1),2): one store + one strided-pair max.
        conv_scr[...] = x
        pooled = jnp.maximum(conv_scr[pl.ds(0, N2, stride=2), :],
                             conv_scr[pl.ds(1, N2, stride=2), :])  # (N2, C), (b,t)-major
        pool_scr[...] = pooled

        # ---- Flatten + Linear1, fused: for pooled step t, gather the (Bt, C)
        # slab (stride T2) and hit its (C, E) weight slab; tree-sum partials.
        # TODO(synk): when C % 128 == 0 this should be ONE lane-dense
        # (Bt, T2*C) @ (T2*C, E) matmul instead of T2 small dots.
        parts = []
        for t in range(T2):
            xt = pool_scr[pl.ds(t, Bt, stride=T2), :].astype(mm_dtype)
            parts.append(jnp.dot(xt, wl1_ref[t], preferred_element_type=f32))
        h = bl1_ref[...] + _tree_sum(parts)                        # (Bt, E) f32

        # Exact GELU (torch.nn.GELU default).
        h = 0.5 * h * (1.0 + _erf(h * 0.7071067811865476))
        # TODO(synk): nn.Dropout is inference-mode identity here (no RNG mask).

        # ---- classifier: head weights are zero-padded to a 128-lane multiple
        # in the wrapper so this store is lane-dense (no masked partial stores).
        out_ref[...] = jnp.dot(h.astype(mm_dtype), wl2_ref[...],
                               preferred_element_type=f32) + bl2_ref[...]

    return kernel


def _lane_pad(n):
    return ((n + 127) // 128) * 128


def _vmem_estimate(Bt, L, E, C, mm_itemsize):
    T1, T2 = L // 2, L // 4
    emb = 2 * 2 * (Bt * T1) * _lane_pad(E) * mm_itemsize   # 2 inputs, double-buffered
    scr = (Bt * T1 + Bt * T2) * _lane_pad(C) * 4           # conv + pooled scratch
    out = 2 * Bt * 128 * 4
    return emb + scr + out


def _pick_batch_tile(B, L, E, C, mm_itemsize):
    # Tiles must divide B and be either the whole batch or a multiple of 8
    # (keeps every block's second-minor dim 8-aligned).
    cands = [d for d in range(1, B + 1)
             if B % d == 0 and (d == B or d % 8 == 0) and d <= 512]
    budget = 40 * 2 ** 20            # headroom under v7x's 64 MiB physical VMEM
    fit = [d for d in cands if _vmem_estimate(d, L, E, C, mm_itemsize) <= budget]
    if not fit:
        fit = [min(cands)]
    # Prefer an even grid of >= 2 steps so both v7x TensorCores get work.
    even = [d for d in fit if (B // d) >= 2 and (B // d) % 2 == 0]
    return max(even) if even else max(fit)


def dpcnn_forward(text, params, batch_tile=None, matmul_dtype=jnp.float32):
    embed = params["embed"]
    B, L = text.shape
    E = embed.shape[1]
    C = params["w_region"].shape[0]
    assert L % 4 == 0
    T1, T2 = L // 2, L // 4
    num_class = params["w_l2"].shape[0]
    NPAD = _lane_pad(num_class)

    mm = jnp.dtype(matmul_dtype)
    Bt = batch_tile if batch_tile is not None else _pick_batch_tile(B, L, E, C, mm.itemsize)
    assert B % Bt == 0
    assert Bt == B or Bt % 8 == 0, "batch tile must equal B or be a multiple of 8"

    # Token gather + even/odd (time) split in the wrapper; the kernel's first
    # pool is then just max(conv(even), conv(odd)).
    # TODO(synk): the embedding gather could move in-kernel via scalar-prefetched
    # token ids + a DMA row gather to avoid this HBM round trip.
    emb_even = embed[text[:, 0::2]].reshape(B * T1, E).astype(mm)
    emb_odd = embed[text[:, 1::2]].reshape(B * T1, E).astype(mm)

    # Static weight re-layouts.
    wr_k = params["w_region"].T.astype(mm)                         # (E, C)
    br_k = params["b_region"].reshape(1, C).astype(jnp.float32)
    conv_w = lambda w: jnp.transpose(w, (2, 1, 0)).astype(mm)      # (Co,Ci,3)->(3,Ci,Co)
    conv_b = lambda b: b.reshape(1, C).astype(jnp.float32)
    # torch Flatten order is (c, t); kernel flatten order is (t, c) -> (T2, C, E).
    wl1_k = jnp.transpose(params["w_l1"].reshape(E, C, T2), (2, 1, 0)).astype(mm)
    bl1_k = params["b_l1"].reshape(1, E).astype(jnp.float32)
    wl2_k = jnp.zeros((E, NPAD), mm).at[:, :num_class].set(params["w_l2"].T.astype(mm))
    bl2_k = jnp.zeros((1, NPAD), jnp.float32).at[:, :num_class].set(params["b_l2"])

    ins = [emb_even, emb_odd, wr_k, br_k,
           conv_w(params["w_c1"]), conv_b(params["b_c1"]),
           conv_w(params["w_c2"]), conv_b(params["b_c2"]),
           conv_w(params["w_r1"]), conv_b(params["b_r1"]),
           conv_w(params["w_r2"]), conv_b(params["b_r2"]),
           wl1_k, bl1_k, wl2_k, bl2_k]

    def full(a):
        return pl.BlockSpec(a.shape, lambda i, n=a.ndim: (0,) * n)

    emb_spec = pl.BlockSpec((Bt * T1, E), lambda i: (i, 0))
    in_specs = [emb_spec, emb_spec] + [full(a) for a in ins[2:]]

    cp_kwargs = {"dimension_semantics": ("parallel",)}
    est = _vmem_estimate(Bt, L, E, C, mm.itemsize)
    if est > 12 * 2 ** 20:   # only raise the scoped limit when actually needed
        cp_kwargs["vmem_limit_bytes"] = int(min(max(2 * est, 32 * 2 ** 20), 64 * 2 ** 20))

    out = pl.pallas_call(
        make_dpcnn_kernel(Bt, T1, T2, C, E),
        out_shape=jax.ShapeDtypeStruct((B, NPAD), jnp.float32),
        grid=(B // Bt,),
        in_specs=in_specs,
        out_specs=pl.BlockSpec((Bt, NPAD), lambda i: (i, 0)),
        scratch_shapes=[pltpu.VMEM((Bt * T1, C), jnp.float32),
                        pltpu.VMEM((Bt * T2, C), jnp.float32)],
        compiler_params=pltpu.CompilerParams(**cp_kwargs),
    )(*ins)
    return out[:, :num_class]


def reference_forward(text, p):
    # Pure-JAX reference mirroring the PyTorch NCHW forward exactly.
    B, L = text.shape
    emb = p["embed"][text]                                        # (B, L, E)
    x = jnp.einsum("ble,ce->bcl", emb, p["w_region"]) + p["b_region"][None, :, None]
    x = jax.nn.relu(x)                                            # (B, C, L)
    x = jnp.maximum(x[:, :, 0::2], x[:, :, 1::2])                 # pool (2,1)/2

    def conv(y, w, b):
        yp = jnp.pad(y, ((0, 0), (0, 0), (1, 1)))
        out = (jnp.einsum("bct,oc->bot", yp[:, :, :-2], w[:, :, 0])
               + jnp.einsum("bct,oc->bot", yp[:, :, 1:-1], w[:, :, 1])
               + jnp.einsum("bct,oc->bot", yp[:, :, 2:], w[:, :, 2]))
        return out + b[None, :, None]

    x_ = jax.nn.relu(conv(x, p["w_c1"], p["b_c1"]))
    x_ = jax.nn.relu(conv(x_, p["w_c2"], p["b_c2"]))
    x = x + x_
    x_ = jax.nn.relu(conv(x, p["w_r1"], p["b_r1"]))
    x_ = jax.nn.relu(conv(x_, p["w_r2"], p["b_r2"]))
    x = x + x_
    x = jnp.maximum(x[:, :, 0::2], x[:, :, 1::2])                 # (B, C, L//4)
    feat = x.reshape(B, -1)                                       # torch Flatten: (c, t)
    h = feat @ p["w_l1"].T + p["b_l1"]
    h = jax.nn.gelu(h, approximate=False)
    return h @ p["w_l2"].T + p["b_l2"]


if __name__ == "__main__":
    vocab_size, embed_dim, input_len, num_class, padding_idx = 50, 32, 16, 5, 0
    B, C = 2, 4
    T2 = input_len // 4

    key = jax.random.PRNGKey(0)
    ks = jax.random.split(key, 16)

    def init(k, shape, scale=0.1):
        return scale * jax.random.normal(k, shape, dtype=jnp.float32)

    params = {
        "embed":    init(ks[0], (vocab_size, embed_dim)).at[padding_idx].set(0.0),
        "w_region": init(ks[1], (C, embed_dim)),        # torch (C,1,1,E) squeezed
        "b_region": init(ks[2], (C,)),
        "w_c1": init(ks[3], (C, C, 3)), "b_c1": init(ks[4], (C,)),
        "w_c2": init(ks[5], (C, C, 3)), "b_c2": init(ks[6], (C,)),
        "w_r1": init(ks[7], (C, C, 3)), "b_r1": init(ks[8], (C,)),
        "w_r2": init(ks[9], (C, C, 3)), "b_r2": init(ks[10], (C,)),
        "w_l1": init(ks[11], (embed_dim, C * T2)), "b_l1": init(ks[12], (embed_dim,)),
        "w_l2": init(ks[13], (num_class, embed_dim)), "b_l2": init(ks[14], (num_class,)),
    }
    text = jax.random.randint(ks[15], (B, input_len), 0, vocab_size, dtype=jnp.int32)

    ref = jax.block_until_ready(reference_forward(text, params))

    # f32 MXU path (exact match to the PyTorch forward).
    out = jax.block_until_ready(dpcnn_forward(text, params))
    assert out.shape == (B, num_class)
    np.testing.assert_allclose(np.asarray(out), np.asarray(ref), rtol=1e-4, atol=1e-4)

    # bf16 MXU-operand path (f32 accumulation) — looser tolerance.
    out_bf16 = jax.block_until_ready(
        dpcnn_forward(text, params, matmul_dtype=jnp.bfloat16))
    np.testing.assert_allclose(np.asarray(out_bf16), np.asarray(ref),
                               rtol=5e-2, atol=5e-2)

    print("KERNEL_OK")
</pallas_src>

<mosaic_0001>
module attributes {stable_mosaic.version = 11 : i64} {
  func.func @kernel(%arg0: i32, %arg1: memref<16x32xf32, #tpu.memory_space<vmem>>, %arg2: memref<16x32xf32, #tpu.memory_space<vmem>>, %arg3: memref<32x4xf32, #tpu.memory_space<vmem>>, %arg4: memref<1x4xf32, #tpu.memory_space<vmem>>, %arg5: memref<3x4x4xf32, #tpu.memory_space<vmem>>, %arg6: memref<1x4xf32, #tpu.memory_space<vmem>>, %arg7: memref<3x4x4xf32, #tpu.memory_space<vmem>>, %arg8: memref<1x4xf32, #tpu.memory_space<vmem>>, %arg9: memref<3x4x4xf32, #tpu.memory_space<vmem>>, %arg10: memref<1x4xf32, #tpu.memory_space<vmem>>, %arg11: memref<3x4x4xf32, #tpu.memory_space<vmem>>, %arg12: memref<1x4xf32, #tpu.memory_space<vmem>>, %arg13: memref<4x4x32xf32, #tpu.memory_space<vmem>>, %arg14: memref<1x32xf32, #tpu.memory_space<vmem>>, %arg15: memref<32x128xf32, #tpu.memory_space<vmem>>, %arg16: memref<1x128xf32, #tpu.memory_space<vmem>>, %arg17: memref<2x128xf32, #tpu.memory_space<vmem>>, %arg18: memref<16x4xf32, #tpu.memory_space<vmem>>, %arg19: memref<8x4xf32, #tpu.memory_space<vmem>>) attributes {dimension_semantics = [#tpu.dimension_semantics<parallel>], iteration_bounds = array<i64: 1>, scalar_prefetch = 0 : i64, scratch_operands = 2 : i64, tpu.core_type = #tpu.core_type<tc>, window_params = [{transform_indices = @transform_0, window_bounds = array<i64: 16, 32>}, {transform_indices = @transform_1, window_bounds = array<i64: 16, 32>}, {pipeline_mode = #tpu.pipeline_mode<synchronous>, transform_indices = @transform_2, window_bounds = array<i64: 32, 4>}, {pipeline_mode = #tpu.pipeline_mode<synchronous>, transform_indices = @transform_3, window_bounds = array<i64: 1, 4>}, {pipeline_mode = #tpu.pipeline_mode<synchronous>, transform_indices = @transform_4, window_bounds = array<i64: 3, 4, 4>}, {pipeline_mode = #tpu.pipeline_mode<synchronous>, transform_indices = @transform_5, window_bounds = array<i64: 1, 4>}, {pipeline_mode = #tpu.pipeline_mode<synchronous>, transform_indices = @transform_6, window_bounds = array<i64: 3, 4, 4>}, {pipeline_mode = #tpu.pipeline_mode<synchronous>, transform_indices = @transform_7, window_bounds = array<i64: 1, 4>}, {pipeline_mode = #tpu.pipeline_mode<synchronous>, transform_indices = @transform_8, window_bounds = array<i64: 3, 4, 4>}, {pipeline_mode = #tpu.pipeline_mode<synchronous>, transform_indices = @transform_9, window_bounds = array<i64: 1, 4>}, {pipeline_mode = #tpu.pipeline_mode<synchronous>, transform_indices = @transform_10, window_bounds = array<i64: 3, 4, 4>}, {pipeline_mode = #tpu.pipeline_mode<synchronous>, transform_indices = @transform_11, window_bounds = array<i64: 1, 4>}, {pipeline_mode = #tpu.pipeline_mode<synchronous>, transform_indices = @transform_12, window_bounds = array<i64: 4, 4, 32>}, {pipeline_mode = #tpu.pipeline_mode<synchronous>, transform_indices = @transform_13, window_bounds = array<i64: 1, 32>}, {pipeline_mode = #tpu.pipeline_mode<synchronous>, transform_indices = @transform_14, window_bounds = array<i64: 32, 128>}, {pipeline_mode = #tpu.pipeline_mode<synchronous>, transform_indices = @transform_15, window_bounds = array<i64: 1, 128>}, {transform_indices = @transform_16, window_bounds = array<i64: 2, 128>}]} {
    %0 = tpu.iota {dimensions = array<i32: 0>} : vector<16x4xi32>
    %c7_i32 = arith.constant 7 : i32
    %1 = vector.broadcast %c7_i32 : i32 to vector<16x4xi32>
    %2 = arith.andi %0, %1 : vector<16x4xi32>
    %c0_i32 = arith.constant 0 : i32
    %3 = vector.broadcast %c0_i32 : i32 to vector<16x4xi32>
    %4 = arith.cmpi eq, %2, %3 : vector<16x4xi32>
    %cst = arith.constant 0.000000e+00 : f32
    %cst_0 = arith.constant 1.000000e+00 : f32
    %5 = vector.broadcast %cst : f32 to vector<16x4xf32>
    %6 = vector.broadcast %cst_0 : f32 to vector<16x4xf32>
    %7 = arith.select %4, %5, %6 : vector<16x4xi1>, vector<16x4xf32>
    %c7_i32_1 = arith.constant 7 : i32
    %8 = vector.broadcast %c7_i32_1 : i32 to vector<16x4xi32>
    %9 = arith.cmpi eq, %2, %8 : vector<16x4xi32>
    %cst_2 = arith.constant 0.000000e+00 : f32
    %cst_3 = arith.constant 1.000000e+00 : f32
    %10 = vector.broadcast %cst_2 : f32 to vector<16x4xf32>
    %11 = vector.broadcast %cst_3 : f32 to vector<16x4xf32>
    %12 = arith.select %9, %10, %11 : vector<16x4xi1>, vector<16x4xf32>
    %c0 = arith.constant 0 : index
    %c0_4 = arith.constant 0 : index
    %13 = vector.load %arg4[%c0, %c0_4] : memref<1x4xf32, #tpu.memory_space<vmem>>, vector<1x4xf32>
    %c0_5 = arith.constant 0 : index
    %c0_6 = arith.constant 0 : index
    %14 = vector.load %arg1[%c0_5, %c0_6] : memref<16x32xf32, #tpu.memory_space<vmem>>, vector<16x32xf32>
    %c0_7 = arith.constant 0 : index
    %c0_8 = arith.constant 0 : index
    %15 = vector.load %arg3[%c0_7, %c0_8] : memref<32x4xf32, #tpu.memory_space<vmem>>, vector<32x4xf32>
    %cst_9 = arith.constant dense<0.000000e+00> : vector<16x4xf32>
    %16 = tpu.matmul %14, %15, %cst_9 {dimension_numbers = #tpu.dot_dimension_numbers<[1], [0], [0], [1], [0, 0, 1, 1], [], []>} : vector<16x32xf32>, vector<32x4xf32>, vector<16x4xf32> -> vector<16x4xf32>
    %17 = vector.broadcast %13 : vector<1x4xf32> to vector<16x4xf32>
    %18 = arith.addf %16, %17 : vector<16x4xf32>
    %c0_10 = arith.constant 0 : index
    %c0_11 = arith.constant 0 : index
    %19 = vector.load %arg2[%c0_10, %c0_11] : memref<16x32xf32, #tpu.memory_space<vmem>>, vector<16x32xf32>
    %c0_12 = arith.constant 0 : index
    %c0_13 = arith.constant 0 : index
    %20 = vector.load %arg3[%c0_12, %c0_13] : memref<32x4xf32, #tpu.memory_space<vmem>>, vector<32x4xf32>
    %cst_14 = arith.constant dense<0.000000e+00> : vector<16x4xf32>
    %21 = tpu.matmul %19, %20, %cst_14 {dimension_numbers = #tpu.dot_dimension_numbers<[1], [0], [0], [1], [0, 0, 1, 1], [], []>} : vector<16x32xf32>, vector<32x4xf32>, vector<16x4xf32> -> vector<16x4xf32>
    %22 = vector.broadcast %13 : vector<1x4xf32> to vector<16x4xf32>
    %23 = arith.addf %21, %22 : vector<16x4xf32>
    %cst_15 = arith.constant 0.000000e+00 : f32
    %24 = vector.broadcast %cst_15 : f32 to vector<16x4xf32>
    %25 = arith.maximumf %18, %24 : vector<16x4xf32>
    %cst_16 = arith.constant 0.000000e+00 : f32
    %26 = vector.broadcast %cst_16 : f32 to vector<16x4xf32>
    %27 = arith.maximumf %23, %26 : vector<16x4xf32>
    %28 = arith.maximumf %25, %27 : vector<16x4xf32>
    %c1_i32 = arith.constant 1 : i32
    %29 = tpu.dynamic_rotate %28 by %c1_i32 dim 0 : vector<16x4xf32>, i32 -> vector<16x4xf32>
    %30 = arith.mulf %29, %7 : vector<16x4xf32>
    %c15_i32 = arith.constant 15 : i32
    %31 = tpu.dynamic_rotate %28 by %c15_i32 dim 0 : vector<16x4xf32>, i32 -> vector<16x4xf32>
    %32 = arith.mulf %31, %12 : vector<16x4xf32>
    %c0_17 = arith.constant 0 : index
    %c0_18 = arith.constant 0 : index
    %c0_19 = arith.constant 0 : index
    %33 = vector.load %arg5[%c0_17, %c0_18, %c0_19] : memref<3x4x4xf32, #tpu.memory_space<vmem>>, vector<1x4x4xf32>
    %34 = vector.shape_cast %33 : vector<1x4x4xf32> to vector<4x4xf32>
    %cst_20 = arith.constant dense<0.000000e+00> : vector<16x4xf32>
    %35 = tpu.matmul %30, %34, %cst_20 {dimension_numbers = #tpu.dot_dimension_numbers<[1], [0], [0], [1], [0, 0, 1, 1], [], []>} : vector<16x4xf32>, vector<4x4xf32>, vector<16x4xf32> -> vector<16x4xf32>
    %c1 = arith.constant 1 : index
    %c0_21 = arith.constant 0 : index
    %c0_22 = arith.constant 0 : index
    %36 = vector.load %arg5[%c1, %c0_21, %c0_22] : memref<3x4x4xf32, #tpu.memory_space<vmem>>, vector<1x4x4xf32>
    %37 = vector.shape_cast %36 : vector<1x4x4xf32> to vector<4x4xf32>
    %cst_23 = arith.constant dense<0.000000e+00> : vector<16x4xf32>
    %38 = tpu.matmul %28, %37, %cst_23 {dimension_numbers = #tpu.dot_dimension_numbers<[1], [0], [0], [1], [0, 0, 1, 1], [], []>} : vector<16x4xf32>, vector<4x4xf32>, vector<16x4xf32> -> vector<16x4xf32>
    %c2 = arith.constant 2 : index
    %c0_24 = arith.constant 0 : index
    %c0_25 = arith.constant 0 : index
    %39 = vector.load %arg5[%c2, %c0_24, %c0_25] : memref<3x4x4xf32, #tpu.memory_space<vmem>>, vector<1x4x4xf32>
    %40 = vector.shape_cast %39 : vector<1x4x4xf32> to vector<4x4xf32>
    %cst_26 = arith.constant dense<0.000000e+00> : vector<16x4xf32>
    %41 = tpu.matmul %32, %40, %cst_26 {dimension_numbers = #tpu.dot_dimension_numbers<[1], [0], [0], [1], [0, 0, 1, 1], [], []>} : vector<16x4xf32>, vector<4x4xf32>, vector<16x4xf32> -> vector<16x4xf32>
    %42 = arith.addf %35, %38 : vector<16x4xf32>
    %c0_27 = arith.constant 0 : index
    %c0_28 = arith.constant 0 : index
    %43 = vector.load %arg6[%c0_27, %c0_28] : memref<1x4xf32, #tpu.memory_space<vmem>>, vector<1x4xf32>
    %44 = vector.broadcast %43 : vector<1x4xf32> to vector<16x4xf32>
    %45 = arith.addf %41, %44 : vector<16x4xf32>
    %46 = arith.addf %42, %45 : vector<16x4xf32>
    %cst_29 = arith.constant 0.000000e+00 : f32
    %47 = vector.broadcast %cst_29 : f32 to vector<16x4xf32>
    %48 = arith.maximumf %46, %47 : vector<16x4xf32>
    %c1_i32_30 = arith.constant 1 : i32
    %49 = tpu.dynamic_rotate %48 by %c1_i32_30 dim 0 : vector<16x4xf32>, i32 -> vector<16x4xf32>
    %50 = arith.mulf %49, %7 : vector<16x4xf32>
    %c15_i32_31 = arith.constant 15 : i32
    %51 = tpu.dynamic_rotate %48 by %c15_i32_31 dim 0 : vector<16x4xf32>, i32 -> vector<16x4xf32>
    %52 = arith.mulf %51, %12 : vector<16x4xf32>
    %c0_32 = arith.constant 0 : index
    %c0_33 = arith.constant 0 : index
    %c0_34 = arith.constant 0 : index
    %53 = vector.load %arg7[%c0_32, %c0_33, %c0_34] : memref<3x4x4xf32, #tpu.memory_space<vmem>>, vector<1x4x4xf32>
    %54 = vector.shape_cast %53 : vector<1x4x4xf32> to vector<4x4xf32>
    %cst_35 = arith.constant dense<0.000000e+00> : vector<16x4xf32>
    %55 = tpu.matmul %50, %54, %cst_35 {dimension_numbers = #tpu.dot_dimension_numbers<[1], [0], [0], [1], [0, 0, 1, 1], [], []>} : vector<16x4xf32>, vector<4x4xf32>, vector<16x4xf32> -> vector<16x4xf32>
    %c1_36 = arith.constant 1 : index
    %c0_37 = arith.constant 0 : index
    %c0_38 = arith.constant 0 : index
    %56 = vector.load %arg7[%c1_36, %c0_37, %c0_38] : memref<3x4x4xf32, #tpu.memory_space<vmem>>, vector<1x4x4xf32>
    %57 = vector.shape_cast %56 : vector<1x4x4xf32> to vector<4x4xf32>
    %cst_39 = arith.constant dense<0.000000e+00> : vector<16x4xf32>
    %58 = tpu.matmul %48, %57, %cst_39 {dimension_numbers = #tpu.dot_dimension_numbers<[1], [0], [0], [1], [0, 0, 1, 1], [], []>} : vector<16x4xf32>, vector<4x4xf32>, vector<16x4xf32> -> vector<16x4xf32>
    %c2_40 = arith.constant 2 : index
    %c0_41 = arith.constant 0 : index
    %c0_42 = arith.constant 0 : index
    %59 = vector.load %arg7[%c2_40, %c0_41, %c0_42] : memref<3x4x4xf32, #tpu.memory_space<vmem>>, vector<1x4x4xf32>
    %60 = vector.shape_cast %59 : vector<1x4x4xf32> to vector<4x4xf32>
    %cst_43 = arith.constant dense<0.000000e+00> : vector<16x4xf32>
    %61 = tpu.matmul %52, %60, %cst_43 {dimension_numbers = #tpu.dot_dimension_numbers<[1], [0], [0], [1], [0, 0, 1, 1], [], []>} : vector<16x4xf32>, vector<4x4xf32>, vector<16x4xf32> -> vector<16x4xf32>
    %62 = arith.addf %55, %58 : vector<16x4xf32>
    %c0_44 = arith.constant 0 : index
    %c0_45 = arith.constant 0 : index
    %63 = vector.load %arg8[%c0_44, %c0_45] : memref<1x4xf32, #tpu.memory_space<vmem>>, vector<1x4xf32>
    %64 = vector.broadcast %63 : vector<1x4xf32> to vector<16x4xf32>
    %65 = arith.addf %61, %64 : vector<16x4xf32>
    %66 = arith.addf %62, %65 : vector<16x4xf32>
    %cst_46 = arith.constant 0.000000e+00 : f32
    %67 = vector.broadcast %cst_46 : f32 to vector<16x4xf32>
    %68 = arith.maximumf %66, %67 : vector<16x4xf32>
    %69 = arith.addf %28, %68 : vector<16x4xf32>
    %c1_i32_47 = arith.constant 1 : i32
    %70 = tpu.dynamic_rotate %69 by %c1_i32_47 dim 0 : vector<16x4xf32>, i32 -> vector<16x4xf32>
    %71 = arith.mulf %70, %7 : vector<16x4xf32>
    %c15_i32_48 = arith.constant 15 : i32
    %72 = tpu.dynamic_rotate %69 by %c15_i32_48 dim 0 : vector<16x4xf32>, i32 -> vector<16x4xf32>
    %73 = arith.mulf %72, %12 : vector<16x4xf32>
    %c0_49 = arith.constant 0 : index
    %c0_50 = arith.constant 0 : index
    %c0_51 = arith.constant 0 : index
    %74 = vector.load %arg9[%c0_49, %c0_50, %c0_51] : memref<3x4x4xf32, #tpu.memory_space<vmem>>, vector<1x4x4xf32>
    %75 = vector.shape_cast %74 : vector<1x4x4xf32> to vector<4x4xf32>
    %cst_52 = arith.constant dense<0.000000e+00> : vector<16x4xf32>
    %76 = tpu.matmul %71, %75, %cst_52 {dimension_numbers = #tpu.dot_dimension_numbers<[1], [0], [0], [1], [0, 0, 1, 1], [], []>} : vector<16x4xf32>, vector<4x4xf32>, vector<16x4xf32> -> vector<16x4xf32>
    %c1_53 = arith.constant 1 : index
    %c0_54 = arith.constant 0 : index
    %c0_55 = arith.constant 0 : index
    %77 = vector.load %arg9[%c1_53, %c0_54, %c0_55] : memref<3x4x4xf32, #tpu.memory_space<vmem>>, vector<1x4x4xf32>
    %78 = vector.shape_cast %77 : vector<1x4x4xf32> to vector<4x4xf32>
    %cst_56 = arith.constant dense<0.000000e+00> : vector<16x4xf32>
    %79 = tpu.matmul %69, %78, %cst_56 {dimension_numbers = #tpu.dot_dimension_numbers<[1], [0], [0], [1], [0, 0, 1, 1], [], []>} : vector<16x4xf32>, vector<4x4xf32>, vector<16x4xf32> -> vector<16x4xf32>
    %c2_57 = arith.constant 2 : index
    %c0_58 = arith.constant 0 : index
    %c0_59 = arith.constant 0 : index
    %80 = vector.load %arg9[%c2_57, %c0_58, %c0_59] : memref<3x4x4xf32, #tpu.memory_space<vmem>>, vector<1x4x4xf32>
    %81 = vector.shape_cast %80 : vector<1x4x4xf32> to vector<4x4xf32>
    %cst_60 = arith.constant dense<0.000000e+00> : vector<16x4xf32>
    %82 = tpu.matmul %73, %81, %cst_60 {dimension_numbers = #tpu.dot_dimension_numbers<[1], [0], [0], [1], [0, 0, 1, 1], [], []>} : vector<16x4xf32>, vector<4x4xf32>, vector<16x4xf32> -> vector<16x4xf32>
    %83 = arith.addf %76, %79 : vector<16x4xf32>
    %c0_61 = arith.constant 0 : index
    %c0_62 = arith.constant 0 : index
    %84 = vector.load %arg10[%c0_61, %c0_62] : memref<1x4xf32, #tpu.memory_space<vmem>>, vector<1x4xf32>
    %85 = vector.broadcast %84 : vector<1x4xf32> to vector<16x4xf32>
    %86 = arith.addf %82, %85 : vector<16x4xf32>
    %87 = arith.addf %83, %86 : vector<16x4xf32>
    %cst_63 = arith.constant 0.000000e+00 : f32
    %88 = vector.broadcast %cst_63 : f32 to vector<16x4xf32>
    %89 = arith.maximumf %87, %88 : vector<16x4xf32>
    %c1_i32_64 = arith.constant 1 : i32
    %90 = tpu.dynamic_rotate %89 by %c1_i32_64 dim 0 : vector<16x4xf32>, i32 -> vector<16x4xf32>
    %91 = arith.mulf %90, %7 : vector<16x4xf32>
    %c15_i32_65 = arith.constant 15 : i32
    %92 = tpu.dynamic_rotate %89 by %c15_i32_65 dim 0 : vector<16x4xf32>, i32 -> vector<16x4xf32>
    %93 = arith.mulf %92, %12 : vector<16x4xf32>
    %c0_66 = arith.constant 0 : index
    %c0_67 = arith.constant 0 : index
    %c0_68 = arith.constant 0 : index
    %94 = vector.load %arg11[%c0_66, %c0_67, %c0_68] : memref<3x4x4xf32, #tpu.memory_space<vmem>>, vector<1x4x4xf32>
    %95 = vector.shape_cast %94 : vector<1x4x4xf32> to vector<4x4xf32>
    %cst_69 = arith.constant dense<0.000000e+00> : vector<16x4xf32>
    %96 = tpu.matmul %91, %95, %cst_69 {dimension_numbers = #tpu.dot_dimension_numbers<[1], [0], [0], [1], [0, 0, 1, 1], [], []>} : vector<16x4xf32>, vector<4x4xf32>, vector<16x4xf32> -> vector<16x4xf32>
    %c1_70 = arith.constant 1 : index
    %c0_71 = arith.constant 0 : index
    %c0_72 = arith.constant 0 : index
    %97 = vector.load %arg11[%c1_70, %c0_71, %c0_72] : memref<3x4x4xf32, #tpu.memory_space<vmem>>, vector<1x4x4xf32>
    %98 = vector.shape_cast %97 : vector<1x4x4xf32> to vector<4x4xf32>
    %cst_73 = arith.constant dense<0.000000e+00> : vector<16x4xf32>
    %99 = tpu.matmul %89, %98, %cst_73 {dimension_numbers = #tpu.dot_dimension_numbers<[1], [0], [0], [1], [0, 0, 1, 1], [], []>} : vector<16x4xf32>, vector<4x4xf32>, vector<16x4xf32> -> vector<16x4xf32>
    %c2_74 = arith.constant 2 : index
    %c0_75 = arith.constant 0 : index
    %c0_76 = arith.constant 0 : index
    %100 = vector.load %arg11[%c2_74, %c0_75, %c0_76] : memref<3x4x4xf32, #tpu.memory_space<vmem>>, vector<1x4x4xf32>
    %101 = vector.shape_cast %100 : vector<1x4x4xf32> to vector<4x4xf32>
    %cst_77 = arith.constant dense<0.000000e+00> : vector<16x4xf32>
    %102 = tpu.matmul %93, %101, %cst_77 {dimension_numbers = #tpu.dot_dimension_numbers<[1], [0], [0], [1], [0, 0, 1, 1], [], []>} : vector<16x4xf32>, vector<4x4xf32>, vector<16x4xf32> -> vector<16x4xf32>
    %103 = arith.addf %96, %99 : vector<16x4xf32>
    %c0_78 = arith.constant 0 : index
    %c0_79 = arith.constant 0 : index
    %104 = vector.load %arg12[%c0_78, %c0_79] : memref<1x4xf32, #tpu.memory_space<vmem>>, vector<1x4xf32>
    %105 = vector.broadcast %104 : vector<1x4xf32> to vector<16x4xf32>
    %106 = arith.addf %102, %105 : vector<16x4xf32>
    %107 = arith.addf %103, %106 : vector<16x4xf32>
    %cst_80 = arith.constant 0.000000e+00 : f32
    %108 = vector.broadcast %cst_80 : f32 to vector<16x4xf32>
    %109 = arith.maximumf %107, %108 : vector<16x4xf32>
    %110 = arith.addf %69, %109 : vector<16x4xf32>
    %c0_81 = arith.constant 0 : index
    %c0_82 = arith.constant 0 : index
    %111 = vector.load %arg18[%c0_81, %c0_82] : memref<16x4xf32, #tpu.memory_space<vmem>>, vector<16x4xf32>
    tpu.vector_store %arg18[%c0_81, %c0_82], %110 {strides = array<i32>} : memref<16x4xf32, #tpu.memory_space<vmem>>, vector<16x4xf32>,
    %c0_83 = arith.constant 0 : index
    %c0_84 = arith.constant 0 : index
    %112 = tpu.strided_load %arg18[%c0_83, %c0_84] {strides = array<i32: 2, 1>} : memref<16x4xf32, #tpu.memory_space<vmem>>, vector<8x4xf32>
    %c1_85 = arith.constant 1 : index
    %c0_86 = arith.constant 0 : index
    %113 = tpu.strided_load %arg18[%c1_85, %c0_86] {strides = array<i32: 2, 1>} : memref<16x4xf32, #tpu.memory_space<vmem>>, vector<8x4xf32>
    %114 = arith.maximumf %112, %113 : vector<8x4xf32>
    %c0_87 = arith.constant 0 : index
    %c0_88 = arith.constant 0 : index
    %115 = vector.load %arg19[%c0_87, %c0_88] : memref<8x4xf32, #tpu.memory_space<vmem>>, vector<8x4xf32>
    tpu.vector_store %arg19[%c0_87, %c0_88], %114 {strides = array<i32>} : memref<8x4xf32, #tpu.memory_space<vmem>>, vector<8x4xf32>,
    %c0_89 = arith.constant 0 : index
    %c0_90 = arith.constant 0 : index
    %116 = tpu.strided_load %arg19[%c0_89, %c0_90] {strides = array<i32: 4, 1>} : memref<8x4xf32, #tpu.memory_space<vmem>>, vector<2x4xf32>
    %c0_91 = arith.constant 0 : index
    %c0_92 = arith.constant 0 : index
    %c0_93 = arith.constant 0 : index
    %117 = vector.load %arg13[%c0_91, %c0_92, %c0_93] : memref<4x4x32xf32, #tpu.memory_space<vmem>>, vector<1x4x32xf32>
    %118 = vector.shape_cast %117 : vector<1x4x32xf32> to vector<4x32xf32>
    %cst_94 = arith.constant dense<0.000000e+00> : vector<2x32xf32>
    %119 = tpu.matmul %116, %118, %cst_94 {dimension_numbers = #tpu.dot_dimension_numbers<[1], [0], [0], [1], [0, 0, 1, 1], [], []>} : vector<2x4xf32>, vector<4x32xf32>, vector<2x32xf32> -> vector<2x32xf32>
    %c1_95 = arith.constant 1 : index
    %c0_96 = arith.constant 0 : index
    %120 = tpu.strided_load %arg19[%c1_95, %c0_96] {strides = array<i32: 4, 1>} : memref<8x4xf32, #tpu.memory_space<vmem>>, vector<2x4xf32>
    %c1_97 = arith.constant 1 : index
    %c0_98 = arith.constant 0 : index
    %c0_99 = arith.constant 0 : index
    %121 = vector.load %arg13[%c1_97, %c0_98, %c0_99] : memref<4x4x32xf32, #tpu.memory_space<vmem>>, vector<1x4x32xf32>
    %122 = vector.shape_cast %121 : vector<1x4x32xf32> to vector<4x32xf32>
    %cst_100 = arith.constant dense<0.000000e+00> : vector<2x32xf32>
    %123 = tpu.matmul %120, %122, %cst_100 {dimension_numbers = #tpu.dot_dimension_numbers<[1], [0], [0], [1], [0, 0, 1, 1], [], []>} : vector<2x4xf32>, vector<4x32xf32>, vector<2x32xf32> -> vector<2x32xf32>
    %c2_101 = arith.constant 2 : index
    %c0_102 = arith.constant 0 : index
    %124 = tpu.strided_load %arg19[%c2_101, %c0_102] {strides = array<i32: 4, 1>} : memref<8x4xf32, #tpu.memory_space<vmem>>, vector<2x4xf32>
    %c2_103 = arith.constant 2 : index
    %c0_104 = arith.constant 0 : index
    %c0_105 = arith.constant 0 : index
    %125 = vector.load %arg13[%c2_103, %c0_104, %c0_105] : memref<4x4x32xf32, #tpu.memory_space<vmem>>, vector<1x4x32xf32>
    %126 = vector.shape_cast %125 : vector<1x4x32xf32> to vector<4x32xf32>
    %cst_106 = arith.constant dense<0.000000e+00> : vector<2x32xf32>
    %127 = tpu.matmul %124, %126, %cst_106 {dimension_numbers = #tpu.dot_dimension_numbers<[1], [0], [0], [1], [0, 0, 1, 1], [], []>} : vector<2x4xf32>, vector<4x32xf32>, vector<2x32xf32> -> vector<2x32xf32>
    %c3 = arith.constant 3 : index
    %c0_107 = arith.constant 0 : index
    %128 = tpu.strided_load %arg19[%c3, %c0_107] {strides = array<i32: 4, 1>} : memref<8x4xf32, #tpu.memory_space<vmem>>, vector<2x4xf32>
    %c3_108 = arith.constant 3 : index
    %c0_109 = arith.constant 0 : index
    %c0_110 = arith.constant 0 : index
    %129 = vector.load %arg13[%c3_108, %c0_109, %c0_110] : memref<4x4x32xf32, #tpu.memory_space<vmem>>, vector<1x4x32xf32>
    %130 = vector.shape_cast %129 : vector<1x4x32xf32> to vector<4x32xf32>
    %cst_111 = arith.constant dense<0.000000e+00> : vector<2x32xf32>
    %131 = tpu.matmul %128, %130, %cst_111 {dimension_numbers = #tpu.dot_dimension_numbers<[1], [0], [0], [1], [0, 0, 1, 1], [], []>} : vector<2x4xf32>, vector<4x32xf32>, vector<2x32xf32> -> vector<2x32xf32>
    %c0_112 = arith.constant 0 : index
    %c0_113 = arith.constant 0 : index
    %132 = vector.load %arg14[%c0_112, %c0_113] : memref<1x32xf32, #tpu.memory_space<vmem>>, vector<1x32xf32>
    %133 = arith.addf %119, %123 : vector<2x32xf32>
    %134 = arith.addf %127, %131 : vector<2x32xf32>
    %135 = arith.addf %133, %134 : vector<2x32xf32>
    %136 = vector.broadcast %132 : vector<1x32xf32> to vector<2x32xf32>
    %137 = arith.addf %136, %135 : vector<2x32xf32>
    %cst_114 = arith.constant 5.000000e-01 : f32
    %138 = vector.broadcast %cst_114 : f32 to vector<2x32xf32>
    %139 = arith.mulf %138, %137 : vector<2x32xf32>
    %cst_115 = arith.constant 0.707106769 : f32
    %140 = vector.broadcast %cst_115 : f32 to vector<2x32xf32>
    %141 = arith.mulf %137, %140 : vector<2x32xf32>
    %cst_116 = arith.constant 0.000000e+00 : f32
    %142 = vector.broadcast %cst_116 : f32 to vector<2x32xf32>
    %143 = arith.cmpf oge, %141, %142 : vector<2x32xf32>
    %cst_117 = arith.constant 1.000000e+00 : f32
    %cst_118 = arith.constant -1.000000e+00 : f32
    %144 = vector.broadcast %cst_117 : f32 to vector<2x32xf32>
    %145 = vector.broadcast %cst_118 : f32 to vector<2x32xf32>
    %146 = arith.select %143, %144, %145 : vector<2x32xi1>, vector<2x32xf32>
    %147 = math.absf %141 : vector<2x32xf32>
    %cst_119 = arith.constant 0.327591091 : f32
    %148 = vector.broadcast %cst_119 : f32 to vector<2x32xf32>
    %149 = arith.mulf %148, %147 : vector<2x32xf32>
    %cst_120 = arith.constant 1.000000e+00 : f32
    %150 = vector.broadcast %cst_120 : f32 to vector<2x32xf32>
    %151 = arith.addf %150, %149 : vector<2x32xf32>
    %cst_121 = arith.constant 1.000000e+00 : f32
    %152 = vector.broadcast %cst_121 : f32 to vector<2x32xf32>
    %153 = arith.divf %152, %151 : vector<2x32xf32>
    %cst_122 = arith.constant 1.06140542 : f32
    %154 = vector.broadcast %cst_122 : f32 to vector<2x32xf32>
    %155 = arith.mulf %154, %153 : vector<2x32xf32>
    %cst_123 = arith.constant -1.45315206 : f32
    %156 = vector.broadcast %cst_123 : f32 to vector<2x32xf32>
    %157 = arith.addf %155, %156 : vector<2x32xf32>
    %158 = arith.mulf %157, %153 : vector<2x32xf32>
    %cst_124 = arith.constant 1.42141378 : f32
    %159 = vector.broadcast %cst_124 : f32 to vector<2x32xf32>
    %160 = arith.addf %158, %159 : vector<2x32xf32>
    %161 = arith.mulf %160, %153 : vector<2x32xf32>
    %cst_125 = arith.constant -0.284496725 : f32
    %162 = vector.broadcast %cst_125 : f32 to vector<2x32xf32>
    %163 = arith.addf %161, %162 : vector<2x32xf32>
    %164 = arith.mulf %163, %153 : vector<2x32xf32>
    %cst_126 = arith.constant 0.254829586 : f32
    %165 = vector.broadcast %cst_126 : f32 to vector<2x32xf32>
    %166 = arith.addf %164, %165 : vector<2x32xf32>
    %167 = arith.mulf %166, %153 : vector<2x32xf32>
    %cst_127 = arith.constant 0.000000e+00 : f32
    %168 = vector.broadcast %cst_127 : f32 to vector<2x32xf32>
    %169 = arith.subf %168, %147 : vector<2x32xf32>
    %170 = arith.mulf %169, %147 : vector<2x32xf32>
    %171 = math.exp %170 : vector<2x32xf32>
    %172 = arith.mulf %167, %171 : vector<2x32xf32>
    %cst_128 = arith.constant 1.000000e+00 : f32
    %173 = vector.broadcast %cst_128 : f32 to vector<2x32xf32>
    %174 = arith.subf %173, %172 : vector<2x32xf32>
    %175 = arith.mulf %146, %174 : vector<2x32xf32>
    %cst_129 = arith.constant 1.000000e+00 : f32
    %176 = vector.broadcast %cst_129 : f32 to vector<2x32xf32>
    %177 = arith.addf %176, %175 : vector<2x32xf32>
    %178 = arith.mulf %139, %177 : vector<2x32xf32>
    %c0_130 = arith.constant 0 : index
    %c0_131 = arith.constant 0 : index
    %179 = vector.load %arg15[%c0_130, %c0_131] : memref<32x128xf32, #tpu.memory_space<vmem>>, vector<32x128xf32>
    %cst_132 = arith.constant dense<0.000000e+00> : vector<2x128xf32>
    %180 = tpu.matmul %178, %179, %cst_132 {dimension_numbers = #tpu.dot_dimension_numbers<[1], [0], [0], [1], [0, 0, 1, 1], [], []>} : vector<2x32xf32>, vector<32x128xf32>, vector<2x128xf32> -> vector<2x128xf32>
    %c0_133 = arith.constant 0 : index
    %c0_134 = arith.constant 0 : index
    %181 = vector.load %arg16[%c0_133, %c0_134] : memref<1x128xf32, #tpu.memory_space<vmem>>, vector<1x128xf32>
    %182 = vector.broadcast %181 : vector<1x128xf32> to vector<2x128xf32>
    %183 = arith.addf %180, %182 : vector<2x128xf32>
    %c0_135 = arith.constant 0 : index
    %c0_136 = arith.constant 0 : index
    %184 = vector.load %arg17[%c0_135, %c0_136] : memref<2x128xf32, #tpu.memory_space<vmem>>, vector<2x128xf32>
    tpu.vector_store %arg17[%c0_135, %c0_136], %183 {strides = array<i32>} : memref<2x128xf32, #tpu.memory_space<vmem>>, vector<2x128xf32>,
    return
  }
  func.func @transform_0(%arg0: i32) -> (i32, i32) {
    %c0_i32 = arith.constant 0 : i32
    %c0_i32_0 = arith.constant 0 : i32
    return %arg0, %c0_i32 : i32, i32
  }
  func.func @transform_1(%arg0: i32) -> (i32, i32) {
    %c0_i32 = arith.constant 0 : i32
    %c0_i32_0 = arith.constant 0 : i32
    return %arg0, %c0_i32 : i32, i32
  }
  func.func @transform_2(%arg0: i32) -> (i32, i32) {
    %c0_i32 = arith.constant 0 : i32
    %c0_i32_0 = arith.constant 0 : i32
    %c0_i32_1 = arith.constant 0 : i32
    return %c0_i32, %c0_i32_0 : i32, i32
  }
  func.func @transform_3(%arg0: i32) -> (i32, i32) {
    %c0_i32 = arith.constant 0 : i32
    %c0_i32_0 = arith.constant 0 : i32
    %c0_i32_1 = arith.constant 0 : i32
    return %c0_i32, %c0_i32_0 : i32, i32
  }
  func.func @transform_4(%arg0: i32) -> (i32, i32, i32) {
    %c0_i32 = arith.constant 0 : i32
    %c0_i32_0 = arith.constant 0 : i32
    %c0_i32_1 = arith.constant 0 : i32
    %c0_i32_2 = arith.constant 0 : i32
    return %c0_i32, %c0_i32_0, %c0_i32_1 : i32, i32, i32
  }
  func.func @transform_5(%arg0: i32) -> (i32, i32) {
    %c0_i32 = arith.constant 0 : i32
    %c0_i32_0 = arith.constant 0 : i32
    %c0_i32_1 = arith.constant 0 : i32
    return %c0_i32, %c0_i32_0 : i32, i32
  }
  func.func @transform_6(%arg0: i32) -> (i32, i32, i32) {
    %c0_i32 = arith.constant 0 : i32
    %c0_i32_0 = arith.constant 0 : i32
    %c0_i32_1 = arith.constant 0 : i32
    %c0_i32_2 = arith.constant 0 : i32
    return %c0_i32, %c0_i32_0, %c0_i32_1 : i32, i32, i32
  }
  func.func @transform_7(%arg0: i32) -> (i32, i32) {
    %c0_i32 = arith.constant 0 : i32
    %c0_i32_0 = arith.constant 0 : i32
    %c0_i32_1 = arith.constant 0 : i32
    return %c0_i32, %c0_i32_0 : i32, i32
  }
  func.func @transform_8(%arg0: i32) -> (i32, i32, i32) {
    %c0_i32 = arith.constant 0 : i32
    %c0_i32_0 = arith.constant 0 : i32
    %c0_i32_1 = arith.constant 0 : i32
    %c0_i32_2 = arith.constant 0 : i32
    return %c0_i32, %c0_i32_0, %c0_i32_1 : i32, i32, i32
  }
  func.func @transform_9(%arg0: i32) -> (i32, i32) {
    %c0_i32 = arith.constant 0 : i32
    %c0_i32_0 = arith.constant 0 : i32
    %c0_i32_1 = arith.constant 0 : i32
    return %c0_i32, %c0_i32_0 : i32, i32
  }
  func.func @transform_10(%arg0: i32) -> (i32, i32, i32) {
    %c0_i32 = arith.constant 0 : i32
    %c0_i32_0 = arith.constant 0 : i32
    %c0_i32_1 = arith.constant 0 : i32
    %c0_i32_2 = arith.constant 0 : i32
    return %c0_i32, %c0_i32_0, %c0_i32_1 : i32, i32, i32
  }
  func.func @transform_11(%arg0: i32) -> (i32, i32) {
    %c0_i32 = arith.constant 0 : i32
    %c0_i32_0 = arith.constant 0 : i32
    %c0_i32_1 = arith.constant 0 : i32
    return %c0_i32, %c0_i32_0 : i32, i32
  }
  func.func @transform_12(%arg0: i32) -> (i32, i32, i32) {
    %c0_i32 = arith.constant 0 : i32
    %c0_i32_0 = arith.constant 0 : i32
    %c0_i32_1 = arith.constant 0 : i32
    %c0_i32_2 = arith.constant 0 : i32
    return %c0_i32, %c0_i32_0, %c0_i32_1 : i32, i32, i32
  }
  func.func @transform_13(%arg0: i32) -> (i32, i32) {
    %c0_i32 = arith.constant 0 : i32
    %c0_i32_0 = arith.constant 0 : i32
    %c0_i32_1 = arith.constant 0 : i32
    return %c0_i32, %c0_i32_0 : i32, i32
  }
  func.func @transform_14(%arg0: i32) -> (i32, i32) {
    %c0_i32 = arith.constant 0 : i32
    %c0_i32_0 = arith.constant 0 : i32
    %c0_i32_1 = arith.constant 0 : i32
    return %c0_i32, %c0_i32_0 : i32, i32
  }
  func.func @transform_15(%arg0: i32) -> (i32, i32) {
    %c0_i32 = arith.constant 0 : i32
    %c0_i32_0 = arith.constant 0 : i32
    %c0_i32_1 = arith.constant 0 : i32
    return %c0_i32, %c0_i32_0 : i32, i32
  }
  func.func @transform_16(%arg0: i32) -> (i32, i32) {
    %c0_i32 = arith.constant 0 : i32
    %c0_i32_0 = arith.constant 0 : i32
    return %arg0, %c0_i32 : i32, i32
  }
}

</mosaic_0001>

<llo_original>
// kernel: tpu_custom_call.1
$region0: #{tpu_custom_call.1}
  #allocation0 [shape = 'u32[]', space=smem, size = 0x4, offset = 0x4, fixed_abs, tag = 'smem constant byte address 0x4 - core index']
  #allocation1 [shape = 'u32[72,128]{1,0:T(1,128)}', space=vmem, size = 0x9000, scoped, tag = 'internal scratch']
  #allocation2 [shape = 'f32[16,4]{1,0:T(8,128)}', space=vmem, size = 0x2000, scoped, tag = 'scratch operand']
  #allocation3 [shape = 'f32[8,4]{1,0:T(8,128)}', space=vmem, size = 0x1000, scoped, tag = 'scratch operand']
  %s0 = inlined_call_operand.vmem [shape: f32[16,32], index: 0, kind: input, shape index: {}]
  %s1 = inlined_call_operand.hbm [shape: f32[16,32], index: 1, kind: input, shape index: {}]
  %s2 = inlined_call_operand.vmem [shape: f32[32,4], index: 2, kind: input, shape index: {}]
  %s3 = inlined_call_operand.vmem [shape: f32[1,4], index: 3, kind: input, shape index: {}]
  %s4 = inlined_call_operand.hbm [shape: f32[3,4,4], index: 4, kind: input, shape index: {}]
  %s5 = inlined_call_operand.hbm [shape: f32[1,4], index: 5, kind: input, shape index: {}]
  %s6 = inlined_call_operand.hbm [shape: f32[3,4,4], index: 6, kind: input, shape index: {}]
  %s7 = inlined_call_operand.hbm [shape: f32[1,4], index: 7, kind: input, shape index: {}]
  %s8 = inlined_call_operand.hbm [shape: f32[3,4,4], index: 8, kind: input, shape index: {}]
  %s9 = inlined_call_operand.hbm [shape: f32[1,4], index: 9, kind: input, shape index: {}]
  %s10 = inlined_call_operand.hbm [shape: f32[3,4,4], index: 10, kind: input, shape index: {}]
  %s11 = inlined_call_operand.hbm [shape: f32[1,4], index: 11, kind: input, shape index: {}]
  %s12 = inlined_call_operand.hbm [shape: f32[4,4,32], index: 12, kind: input, shape index: {}]
  %s13 = inlined_call_operand.hbm [shape: f32[1,32], index: 13, kind: input, shape index: {}]
  %s14 = inlined_call_operand.vmem [shape: f32[32,128], index: 14, kind: input, shape index: {}]
  %s15 = inlined_call_operand.vmem [shape: f32[1,128], index: 15, kind: input, shape index: {}]
  %s16 = inlined_call_operand.hbm [shape: f32[2,128], index: 16, kind: output, shape index: {}]
  %s17 = sld [smem:[#allocation0]]
  $region118: #{tpu_custom_call.1} parent=0
    _
  %s19 = ssub.s32 1, %s17
  %s20 = scalar_select 0, %s19, %s17
  $region1: #{tpu_custom_call.1} parent=0
    #allocation4 [shape = 'u8[8192]{0}', space=vmem, size = 0x2000, scoped, tag = 'input window, operand 1, single buffered']
    #allocation5 [shape = 's32[1]{0}', space=sflag, size = 0x4, scoped, tag = 'scoped memory for tpu_custom_call.1']
    #allocation6 [shape = 's32[1]{0}', space=sflag, size = 0x4, scoped, tag = 'scoped memory for tpu_custom_call.1']
    #allocation7 [shape = 'u8[6144]{0}', space=vmem, size = 0x1800, scoped, tag = 'input window, operand 4, single buffered']
    #allocation8 [shape = 's32[1]{0}', space=sflag, size = 0x4, scoped, tag = 'scoped memory for tpu_custom_call.1']
    #allocation9 [shape = 'u8[512]{0}', space=vmem, size = 0x400, scoped, tag = 'input window, operand 5, single buffered']
    #allocation10 [shape = 'u8[6144]{0}', space=vmem, size = 0x1800, scoped, tag = 'input window, operand 6, single buffered']
    #allocation11 [shape = 's32[1]{0}', space=sflag, size = 0x4, scoped, tag = 'scoped memory for tpu_custom_call.1']
    #allocation12 [shape = 'u8[512]{0}', space=vmem, size = 0x400, scoped, tag = 'input window, operand 7, single buffered']
    #allocation13 [shape = 'u8[6144]{0}', space=vmem, size = 0x1800, scoped, tag = 'input window, operand 8, single buffered']
    #allocation14 [shape = 's32[1]{0}', space=sflag, size = 0x4, scoped, tag = 'scoped memory for tpu_custom_call.1']
    #allocation15 [shape = 'u8[512]{0}', space=vmem, size = 0x400, scoped, tag = 'input window, operand 9, single buffered']
    #allocation16 [shape = 'u8[6144]{0}', space=vmem, size = 0x1800, scoped, tag = 'input window, operand 10, single buffered']
    #allocation17 [shape = 's32[1]{0}', space=sflag, size = 0x4, scoped, tag = 'scoped memory for tpu_custom_call.1']
    #allocation18 [shape = 'u8[512]{0}', space=vmem, size = 0x400, scoped, tag = 'input window, operand 11, single buffered']
    #allocation19 [shape = 'u8[8192]{0}', space=vmem, size = 0x2000, scoped, tag = 'input window, operand 12, single buffered']
    #allocation20 [shape = 's32[1]{0}', space=sflag, size = 0x4, scoped, tag = 'scoped memory for tpu_custom_call.1']
    #allocation21 [shape = 'u8[512]{0}', space=vmem, size = 0x400, scoped, tag = 'input window, operand 13, single buffered']
    #allocation22 [shape = 'u8[1024]{0}', space=vmem, size = 0x400, scoped, tag = 'output window, operand 0, single buffered']
    %21 = vsyncpa [#allocation5], 0
    %22 = vsyncpa [#allocation8], 0
    %23 = vsyncpa [#allocation11], 0
    %24 = vsyncpa [#allocation14], 0
    %25 = vsyncpa [#allocation17], 0
    %26 = vsyncpa [#allocation20], 0
    %27 = vsyncpa [#allocation6], 0
    // Predicated region
    $region2: #{tpu_custom_call.1} parent=1 // pred_check
      _
    $region3: #{tpu_custom_call.1} parent=1 // pred_check_branch
      %29 = sbr.rel (0) target = $region5
    $region4: #{tpu_custom_call.1} parent=1 // pred_region
      _
    $region5: #{tpu_custom_call.1} parent=1 // pred_fallthru
      _
    // Predicated region
    $region6: #{tpu_custom_call.1} parent=1 // pred_check
      _
    $region7: #{tpu_custom_call.1} parent=1 // pred_check_branch
      %31 = sbr.rel (0) target = $region9
    $region8: #{tpu_custom_call.1} parent=1 // pred_region
      %33 = vsyncadd [#allocation5], 0
      %s34 = sshll.u32 %s1, 4
      %s35 = int_to_ptr.hbm [resolvable:$true] %s34
      %s36 = sshll.u32 [#allocation4], 4
      %s37 = int_to_ptr.vmem [resolvable:$true] %s36
      %42 = dma.hbm_to_vmem [thread:$0]  %s35, 256, %s37, [#allocation5], 128, 128, 8
    $region9: #{tpu_custom_call.1} parent=1 // pred_fallthru
      _
    // Predicated region
    $region10: #{tpu_custom_call.1} parent=1 // pred_check
      _
    $region11: #{tpu_custom_call.1} parent=1 // pred_check_branch
      %44 = sbr.rel (0) target = $region13
    $region12: #{tpu_custom_call.1} parent=1 // pred_region
      _
    $region13: #{tpu_custom_call.1} parent=1 // pred_fallthru
      _
    // Predicated region
    $region14: #{tpu_custom_call.1} parent=1 // pred_check
      _
    $region15: #{tpu_custom_call.1} parent=1 // pred_check_branch
      %46 = sbr.rel (0) target = $region17
    $region16: #{tpu_custom_call.1} parent=1 // pred_region
      _
    $region17: #{tpu_custom_call.1} parent=1 // pred_fallthru
      _
    // Predicated region
    $region18: #{tpu_custom_call.1} parent=1 // pred_check
      _
    $region19: #{tpu_custom_call.1} parent=1 // pred_check_branch
      %48 = sbr.rel (0) target = $region21
    $region20: #{tpu_custom_call.1} parent=1 // pred_region
      %50 = vsyncadd [#allocation8], 0
      %s51 = sshll.u32 %s4, 4
      %s52 = int_to_ptr.hbm [resolvable:$true] %s51
      %s53 = sshll.u32 [#allocation7], 4
      %s54 = int_to_ptr.vmem [resolvable:$true] %s53
      %59 = dma.hbm_to_vmem [thread:$0]  %s52, 192, %s54, [#allocation8], 64, 64, 4
    $region21: #{tpu_custom_call.1} parent=1 // pred_fallthru
      _
    // Predicated region
    $region22: #{tpu_custom_call.1} parent=1 // pred_check
      _
    $region23: #{tpu_custom_call.1} parent=1 // pred_check_branch
      %61 = sbr.rel (0) target = $region25
    $region24: #{tpu_custom_call.1} parent=1 // pred_region
      %63 = vsyncadd [#allocation8], 0
      %s65 = sshll.u32 %s5, 4
      %s66 = int_to_ptr.hbm [resolvable:$true] %s65
      %s67 = sshll.u32 [#allocation9], 4
      %s68 = int_to_ptr.vmem [resolvable:$true] %s67
      %70 = dma.hbm_to_vmem [thread:$0]  %s66, 16, %s68, [#allocation8]
    $region25: #{tpu_custom_call.1} parent=1 // pred_fallthru
      _
    // Predicated region
    $region26: #{tpu_custom_call.1} parent=1 // pred_check
      _
    $region27: #{tpu_custom_call.1} parent=1 // pred_check_branch
      %72 = sbr.rel (0) target = $region29
    $region28: #{tpu_custom_call.1} parent=1 // pred_region
      %74 = vsyncadd [#allocation11], 0
      %s75 = sshll.u32 %s6, 4
      %s76 = int_to_ptr.hbm [resolvable:$true] %s75
      %s77 = sshll.u32 [#allocation10], 4
      %s78 = int_to_ptr.vmem [resolvable:$true] %s77
      %83 = dma.hbm_to_vmem [thread:$0]  %s76, 192, %s78, [#allocation11], 64, 64, 4
    $region29: #{tpu_custom_call.1} parent=1 // pred_fallthru
      _
    // Predicated region
    $region30: #{tpu_custom_call.1} parent=1 // pred_check
      _
    $region31: #{tpu_custom_call.1} parent=1 // pred_check_branch
      %85 = sbr.rel (0) target = $region33
    $region32: #{tpu_custom_call.1} parent=1 // pred_region
      %87 = vsyncadd [#allocation11], 0
      %s89 = sshll.u32 %s7, 4
      %s90 = int_to_ptr.hbm [resolvable:$true] %s89
      %s91 = sshll.u32 [#allocation12], 4
      %s92 = int_to_ptr.vmem [resolvable:$true] %s91
      %94 = dma.hbm_to_vmem [thread:$0]  %s90, 16, %s92, [#allocation11]
    $region33: #{tpu_custom_call.1} parent=1 // pred_fallthru
      _
    // Predicated region
    $region34: #{tpu_custom_call.1} parent=1 // pred_check
      _
    $region35: #{tpu_custom_call.1} parent=1 // pred_check_branch
      %96 = sbr.rel (0) target = $region37
    $region36: #{tpu_custom_call.1} parent=1 // pred_region
      %98 = vsyncadd [#allocation14], 0
      %s99 = sshll.u32 %s8, 4
      %s100 = int_to_ptr.hbm [resolvable:$true] %s99
      %s101 = sshll.u32 [#allocation13], 4
      %s102 = int_to_ptr.vmem [resolvable:$true] %s101
      %107 = dma.hbm_to_vmem [thread:$0]  %s100, 192, %s102, [#allocation14], 64, 64, 4
    $region37: #{tpu_custom_call.1} parent=1 // pred_fallthru
      _
    // Predicated region
    $region38: #{tpu_custom_call.1} parent=1 // pred_check
      _
    $region39: #{tpu_custom_call.1} parent=1 // pred_check_branch
      %109 = sbr.rel (0) target = $region41
    $region40: #{tpu_custom_call.1} parent=1 // pred_region
      %111 = vsyncadd [#allocation14], 0
      %s113 = sshll.u32 %s9, 4
      %s114 = int_to_ptr.hbm [resolvable:$true] %s113
      %s115 = sshll.u32 [#allocation15], 4
      %s116 = int_to_ptr.vmem [resolvable:$true] %s115
      %118 = dma.hbm_to_vmem [thread:$0]  %s114, 16, %s116, [#allocation14]
    $region41: #{tpu_custom_call.1} parent=1 // pred_fallthru
      _
    // Predicated region
    $region42: #{tpu_custom_call.1} parent=1 // pred_check
      _
    $region43: #{tpu_custom_call.1} parent=1 // pred_check_branch
      %120 = sbr.rel (0) target = $region45
    $region44: #{tpu_custom_call.1} parent=1 // pred_region
      %122 = vsyncadd [#allocation17], 0
      %s123 = sshll.u32 %s10, 4
      %s124 = int_to_ptr.hbm [resolvable:$true] %s123
      %s125 = sshll.u32 [#allocation16], 4
      %s126 = int_to_ptr.vmem [resolvable:$true] %s125
      %131 = dma.hbm_to_vmem [thread:$0]  %s124, 192, %s126, [#allocation17], 64, 64, 4
    $region45: #{tpu_custom_call.1} parent=1 // pred_fallthru
      _
    // Predicated region
    $region46: #{tpu_custom_call.1} parent=1 // pred_check
      _
    $region47: #{tpu_custom_call.1} parent=1 // pred_check_branch
      %133 = sbr.rel (0) target = $region49
    $region48: #{tpu_custom_call.1} parent=1 // pred_region
      %135 = vsyncadd [#allocation17], 0
      %s137 = sshll.u32 %s11, 4
      %s138 = int_to_ptr.hbm [resolvable:$true] %s137
      %s139 = sshll.u32 [#allocation18], 4
      %s140 = int_to_ptr.vmem [resolvable:$true] %s139
      %142 = dma.hbm_to_vmem [thread:$0]  %s138, 16, %s140, [#allocation17]
    $region49: #{tpu_custom_call.1} parent=1 // pred_fallthru
      _
    // Predicated region
    $region50: #{tpu_custom_call.1} parent=1 // pred_check
      _
    $region51: #{tpu_custom_call.1} parent=1 // pred_check_branch
      %144 = sbr.rel (0) target = $region53
    $region52: #{tpu_custom_call.1} parent=1 // pred_region
      %146 = vsyncadd [#allocation20], 0
      %s147 = sshll.u32 %s12, 4
      %s148 = int_to_ptr.hbm [resolvable:$true] %s147
      %s149 = sshll.u32 [#allocation19], 4
      %s150 = int_to_ptr.vmem [resolvable:$true] %s149
      %155 = dma.hbm_to_vmem [thread:$0]  %s148, 256, %s150, [#allocation20], 64, 64, 4
    $region53: #{tpu_custom_call.1} parent=1 // pred_fallthru
      _
    // Predicated region
    $region54: #{tpu_custom_call.1} parent=1 // pred_check
      _
    $region55: #{tpu_custom_call.1} parent=1 // pred_check_branch
      %157 = sbr.rel (0) target = $region57
    $region56: #{tpu_custom_call.1} parent=1 // pred_region
      %159 = vsyncadd [#allocation20], 0
      %s161 = sshll.u32 %s13, 4
      %s162 = int_to_ptr.hbm [resolvable:$true] %s161
      %s163 = sshll.u32 [#allocation21], 4
      %s164 = int_to_ptr.vmem [resolvable:$true] %s163
      %166 = dma.hbm_to_vmem [thread:$0]  %s162, 16, %s164, [#allocation20]
    $region57: #{tpu_custom_call.1} parent=1 // pred_fallthru
      _
    // Predicated region
    $region58: #{tpu_custom_call.1} parent=1 // pred_check
      _
    $region59: #{tpu_custom_call.1} parent=1 // pred_check_branch
      %168 = sbr.rel (0) target = $region61
    $region60: #{tpu_custom_call.1} parent=1 // pred_region
      _
    $region61: #{tpu_custom_call.1} parent=1 // pred_fallthru
      _
    // Predicated region
    $region62: #{tpu_custom_call.1} parent=1 // pred_check
      _
    $region63: #{tpu_custom_call.1} parent=1 // pred_check_branch
      %170 = sbr.rel (0) target = $region65
    $region64: #{tpu_custom_call.1} parent=1 // pred_region
      _
    $region65: #{tpu_custom_call.1} parent=1 // pred_fallthru
      _
    // Predicated region
    $region66: #{tpu_custom_call.1} parent=1 // pred_check
      _
    $region67: #{tpu_custom_call.1} parent=1 // pred_check_branch
      %172 = sbr.rel (0) target = $region69
    $region68: #{tpu_custom_call.1} parent=1 // pred_region
      %174 = dma.done [#allocation5], 256
    $region69: #{tpu_custom_call.1} parent=1 // pred_fallthru
      _
    // Predicated region
    $region70: #{tpu_custom_call.1} parent=1 // pred_check
      _
    $region71: #{tpu_custom_call.1} parent=1 // pred_check_branch
      %176 = sbr.rel (0) target = $region73
    $region72: #{tpu_custom_call.1} parent=1 // pred_region
      %178 = dma.done [#allocation8], 192
    $region73: #{tpu_custom_call.1} parent=1 // pred_fallthru
      _
    // Predicated region
    $region74: #{tpu_custom_call.1} parent=1 // pred_check
      _
    $region75: #{tpu_custom_call.1} parent=1 // pred_check_branch
      %180 = sbr.rel (0) target = $region77
    $region76: #{tpu_custom_call.1} parent=1 // pred_region
      %182 = dma.done [#allocation8], 16
    $region77: #{tpu_custom_call.1} parent=1 // pred_fallthru
      _
    // Predicated region
    $region78: #{tpu_custom_call.1} parent=1 // pred_check
      _
    $region79: #{tpu_custom_call.1} parent=1 // pred_check_branch
      %184 = sbr.rel (0) target = $region81
    $region80: #{tpu_custom_call.1} parent=1 // pred_region
      %186 = dma.done [#allocation11], 192
    $region81: #{tpu_custom_call.1} parent=1 // pred_fallthru
      _
    // Predicated region
    $region82: #{tpu_custom_call.1} parent=1 // pred_check
      _
    $region83: #{tpu_custom_call.1} parent=1 // pred_check_branch
      %188 = sbr.rel (0) target = $region85
    $region84: #{tpu_custom_call.1} parent=1 // pred_region
      %190 = dma.done [#allocation11], 16
    $region85: #{tpu_custom_call.1} parent=1 // pred_fallthru
      _
    // Predicated region
    $region86: #{tpu_custom_call.1} parent=1 // pred_check
      _
    $region87: #{tpu_custom_call.1} parent=1 // pred_check_branch
      %192 = sbr.rel (0) target = $region89
    $region88: #{tpu_custom_call.1} parent=1 // pred_region
      %194 = dma.done [#allocation14], 192
    $region89: #{tpu_custom_call.1} parent=1 // pred_fallthru
      _
    // Predicated region
    $region90: #{tpu_custom_call.1} parent=1 // pred_check
      _
    $region91: #{tpu_custom_call.1} parent=1 // pred_check_branch
      %196 = sbr.rel (0) target = $region93
    $region92: #{tpu_custom_call.1} parent=1 // pred_region
      %198 = dma.done [#allocation14], 16
    $region93: #{tpu_custom_call.1} parent=1 // pred_fallthru
      _
    // Predicated region
    $region94: #{tpu_custom_call.1} parent=1 // pred_check
      _
    $region95: #{tpu_custom_call.1} parent=1 // pred_check_branch
      %200 = sbr.rel (0) target = $region97
    $region96: #{tpu_custom_call.1} parent=1 // pred_region
      %202 = dma.done [#allocation17], 192
    $region97: #{tpu_custom_call.1} parent=1 // pred_fallthru
      _
    // Predicated region
    $region98: #{tpu_custom_call.1} parent=1 // pred_check
      _
    $region99: #{tpu_custom_call.1} parent=1 // pred_check_branch
      %204 = sbr.rel (0) target = $region101
    $region100: #{tpu_custom_call.1} parent=1 // pred_region
      %206 = dma.done [#allocation17], 16
    $region101: #{tpu_custom_call.1} parent=1 // pred_fallthru
      _
    // Predicated region
    $region102: #{tpu_custom_call.1} parent=1 // pred_check
      _
    $region103: #{tpu_custom_call.1} parent=1 // pred_check_branch
      %208 = sbr.rel (0) target = $region105
    $region104: #{tpu_custom_call.1} parent=1 // pred_region
      %210 = dma.done [#allocation20], 256
    $region105: #{tpu_custom_call.1} parent=1 // pred_fallthru
      _
    // Predicated region
    $region106: #{tpu_custom_call.1} parent=1 // pred_check
      _
    $region107: #{tpu_custom_call.1} parent=1 // pred_check_branch
      %212 = sbr.rel (0) target = $region109
    $region108: #{tpu_custom_call.1} parent=1 // pred_region
      %214 = dma.done [#allocation20], 16
    $region109: #{tpu_custom_call.1} parent=1 // pred_fallthru
      _
    %v215 = vlaneseq
    %v216 = vshrl.u32 %v215, 7
    %v217 = vadd.s32 %v216, 8
    %v218 = vand.u32 %v216, 7
    %v219 = vand.u32 %v217, 7
    %vm220 = vcmp.eq.s32.totalorder %v218, 0
    %vm221 = vcmp.eq.s32.totalorder %v219, 0
    %v222 = vsel %vm220, 0.0, 1.0
    %v223 = vsel %vm221, 0.0, 1.0
    %vm224 = vcmp.eq.s32.totalorder %v218, 7
    %vm225 = vcmp.eq.s32.totalorder %v219, 7
    %v226 = vsel %vm224, 0.0, 1.0
    %v227 = vsel %vm225, 0.0, 1.0
    %v228 = vld [vmem:[%s3] sm:$0x1]
    %v229 = vld [vmem:[%s0] sm:$0xff]
    %v230 = vld [vmem:[%s0 + $0x8] sm:$0xff]
    %v231 = vld [vmem:[%s2] sm:$0xff]
    %v232 = vld [vmem:[%s2 + $0x8] sm:$0xff]
    %v233 = vld [vmem:[%s2 + $0x10] sm:$0xff]
    %v234 = vld [vmem:[%s2 + $0x18] sm:$0xff]
    %v236 = vperm.slane %v228, 0
    %vm238 = vcmask 261120
    %v240 = vsel %vm238, %v229, 0
    %v243 = vsel %vm238, %v230, 0
    %245 = vmatpush.msra.mxu0 0.0
    %246 = vmatpush.msra.mxu0 0.0
    %247 = vmatpush.msra.mxu0 0.0
    %248 = vmatpush.msra.mxu0 0.0
    %249 = vmatpush.msra.mxu0 0.0
    %250 = vmatpush.msra.mxu0 0.0
    %251 = vmatpush.msra.mxu0 0.0
    %252 = vmatpush.msra.mxu0 0.0
    %253 = vmatpush.msra.mxu0 0.0
    %254 = vmatpush.msra.mxu0 0.0
    %255 = vmatpush.msra.mxu0 0.0
    %256 = vmatpush.msra.mxu0 0.0
    %257 = vmatpush.msra.mxu0 %v234
    %258 = vmatpush.msra.mxu0 %v233
    %259 = vmatpush.msra.mxu0 %v232
    %260 = vmatpush.msra.mxu0 %v231
    %261 = vmatmul.f32.gmra.mxu0 %v240
    %v262 = vpop.f32.mrf.mxu0
    %v263 = vadd.f32 %v236, %v262
    %264 = vmatmul.f32.gmra.mxu0 %v243
    %v265 = vpop.f32.mrf.mxu0
    %v266 = vadd.f32 %v236, %v265
    %267 = vdwg.mxu0
    %v268 = vld [vmem:[#allocation4] sm:$0xff]
    %v269 = vld [vmem:[#allocation4 + $0x8] sm:$0xff]
    %v271 = vsel %vm238, %v268, 0
    %v274 = vsel %vm238, %v269, 0
    %276 = vmatpush.msra.mxu0 0.0
    %277 = vmatpush.msra.mxu0 0.0
    %278 = vmatpush.msra.mxu0 0.0
    %279 = vmatpush.msra.mxu0 0.0
    %280 = vmatpush.msra.mxu0 0.0
    %281 = vmatpush.msra.mxu0 0.0
    %282 = vmatpush.msra.mxu0 0.0
    %283 = vmatpush.msra.mxu0 0.0
    %284 = vmatpush.msra.mxu0 0.0
    %285 = vmatpush.msra.mxu0 0.0
    %286 = vmatpush.msra.mxu0 0.0
    %287 = vmatpush.msra.mxu0 0.0
    %288 = vmatpush.msra.mxu0 %v234
    %289 = vmatpush.msra.mxu0 %v233
    %290 = vmatpush.msra.mxu0 %v232
    %291 = vmatpush.msra.mxu0 %v231
    %292 = vmatmul.f32.gmra.mxu0 %v271
    %v293 = vpop.f32.mrf.mxu0
    %v294 = vadd.f32 %v236, %v293
    %295 = vmatmul.f32.gmra.mxu0 %v274
    %v296 = vpop.f32.mrf.mxu0
    %v297 = vadd.f32 %v236, %v296
    %298 = vdwg.mxu0
    %v299 = vmax.f32 %v263, 0.0
    %v300 = vmax.f32 %v266, 0.0
    %v301 = vmax.f32 %v294, 0.0
    %v302 = vmax.f32 %v297, 0.0
    %v303 = vmax.f32 %v299, %v301
    %v304 = vmax.f32 %v300, %v302
    %v305 = vrot.slane %v303, 7
    %v306 = vrot.slane %v304, 7
    %vm307 = vcmp.lt.s32.totalorder %v216, 1
    %v308 = vsel %vm307, %v305, %v306
    %v309 = vsel %vm307, %v306, %v305
    %v310 = vmul.f32 %v309, %v222
    %v311 = vmul.f32 %v308, %v223
    %v312 = vrot.slane %v303, 1
    %v313 = vrot.slane %v304, 1
    %vm314 = vcmp.lt.s32.totalorder %v216, 7
    %v315 = vsel %vm314, %v312, %v313
    %v316 = vsel %vm314, %v313, %v312
    %v317 = vmul.f32 %v315, %v226
    %v318 = vmul.f32 %v316, %v227
    %v319 = vld [vmem:[#allocation7] sm:$0xf]
    %s320 = scalar_lea.vmem [#allocation7], 4
    %v321 = vld [vmem:[%s320] sm:$0xf]
    %vm322 = vcmask 31744
    %v324 = vsel %vm322, %v303, 0
    %v327 = vsel %vm322, %v304, 0
    %vm329 = vcmask 1043456
    %v331 = vsel %vm329, %v321, 0
    %333 = vmatpush.msra.mxu0 0.0
    %334 = vmatpush.msra.mxu0 0.0
    %335 = vmatpush.msra.mxu0 0.0
    %336 = vmatpush.msra.mxu0 0.0
    %337 = vmatpush.msra.mxu0 0.0
    %338 = vmatpush.msra.mxu0 0.0
    %339 = vmatpush.msra.mxu0 0.0
    %340 = vmatpush.msra.mxu0 0.0
    %341 = vmatpush.msra.mxu0 0.0
    %342 = vmatpush.msra.mxu0 0.0
    %343 = vmatpush.msra.mxu0 0.0
    %344 = vmatpush.msra.mxu0 0.0
    %345 = vmatpush.msra.mxu0 0.0
    %346 = vmatpush.msra.mxu0 0.0
    %347 = vmatpush.msra.mxu0 0.0
    %348 = vmatpush.msra.mxu0 %v331
    %349 = vmatmul.f32.gmra.mxu0 %v324
    %v350 = vpop.f32.mrf.mxu0
    %v351 = vadd.f32 0.0, %v350
    %352 = vmatmul.f32.gmra.mxu0 %v327
    %v353 = vpop.f32.mrf.mxu0
    %v354 = vadd.f32 0.0, %v353
    %355 = vdwg.mxu0
    %s356 = scalar_lea.vmem [#allocation7], 8
    %v357 = vld [vmem:[%s356] sm:$0xf]
    %v359 = vsel %vm322, %v310, 0
    %v362 = vsel %vm322, %v311, 0
    %v365 = vsel %vm329, %v319, 0
    %367 = vmatpush.msra.mxu0 0.0
    %368 = vmatpush.msra.mxu0 0.0
    %369 = vmatpush.msra.mxu0 0.0
    %370 = vmatpush.msra.mxu0 0.0
    %371 = vmatpush.msra.mxu0 0.0
    %372 = vmatpush.msra.mxu0 0.0
    %373 = vmatpush.msra.mxu0 0.0
    %374 = vmatpush.msra.mxu0 0.0
    %375 = vmatpush.msra.mxu0 0.0
    %376 = vmatpush.msra.mxu0 0.0
    %377 = vmatpush.msra.mxu0 0.0
    %378 = vmatpush.msra.mxu0 0.0
    %379 = vmatpush.msra.mxu0 0.0
    %380 = vmatpush.msra.mxu0 0.0
    %381 = vmatpush.msra.mxu0 0.0
    %382 = vmatpush.msra.mxu0 %v365
    %383 = vmatmul.f32.gmra.mxu0 %v359
    %v384 = vpop.f32.mrf.mxu0
    %v385 = vadd.f32 %v351, %v384
    %386 = vmatmul.f32.gmra.mxu0 %v362
    %v387 = vpop.f32.mrf.mxu0
    %v388 = vadd.f32 %v354, %v387
    %389 = vdwg.mxu0
    %v390 = vld [vmem:[#allocation9] sm:$0x1]
    %v392 = vperm.slane %v390, 0
    %v395 = vsel %vm322, %v317, 0
    %v398 = vsel %vm322, %v318, 0
    %v401 = vsel %vm329, %v357, 0
    %403 = vmatpush.msra.mxu0 0.0
    %404 = vmatpush.msra.mxu0 0.0
    %405 = vmatpush.msra.mxu0 0.0
    %406 = vmatpush.msra.mxu0 0.0
    %407 = vmatpush.msra.mxu0 0.0
    %408 = vmatpush.msra.mxu0 0.0
    %409 = vmatpush.msra.mxu0 0.0
    %410 = vmatpush.msra.mxu0 0.0
    %411 = vmatpush.msra.mxu0 0.0
    %412 = vmatpush.msra.mxu0 0.0
    %413 = vmatpush.msra.mxu0 0.0
    %414 = vmatpush.msra.mxu0 0.0
    %415 = vmatpush.msra.mxu0 0.0
    %416 = vmatpush.msra.mxu0 0.0
    %417 = vmatpush.msra.mxu0 0.0
    %418 = vmatpush.msra.mxu0 %v401
    %419 = vmatmul.f32.gmra.mxu0 %v395
    %v420 = vpop.f32.mrf.mxu0
    %v421 = vadd.f32 %v392, %v420
    %422 = vmatmul.f32.gmra.mxu0 %v398
    %v423 = vpop.f32.mrf.mxu0
    %v424 = vadd.f32 %v392, %v423
    %425 = vdwg.mxu0
    %v426 = vadd.f32 %v385, %v421
    %v427 = vadd.f32 %v388, %v424
    %v428 = vmax.f32 %v426, 0.0
    %v429 = vmax.f32 %v427, 0.0
    %v430 = vrot.slane %v428, 7
    %v431 = vrot.slane %v429, 7
    %v432 = vsel %vm307, %v430, %v431
    %v433 = vsel %vm307, %v431, %v430
    %v434 = vmul.f32 %v433, %v222
    %v435 = vmul.f32 %v432, %v223
    %v436 = vrot.slane %v428, 1
    %v437 = vrot.slane %v429, 1
    %v438 = vsel %vm314, %v436, %v437
    %v439 = vsel %vm314, %v437, %v436
    %v440 = vmul.f32 %v438, %v226
    %v441 = vmul.f32 %v439, %v227
    %v442 = vld [vmem:[#allocation10] sm:$0xf]
    %s443 = scalar_lea.vmem [#allocation10], 4
    %v444 = vld [vmem:[%s443] sm:$0xf]
    %v446 = vsel %vm322, %v428, 0
    %v449 = vsel %vm322, %v429, 0
    %v452 = vsel %vm329, %v444, 0
    %454 = vmatpush.msra.mxu0 0.0
    %455 = vmatpush.msra.mxu0 0.0
    %456 = vmatpush.msra.mxu0 0.0
    %457 = vmatpush.msra.mxu0 0.0
    %458 = vmatpush.msra.mxu0 0.0
    %459 = vmatpush.msra.mxu0 0.0
    %460 = vmatpush.msra.mxu0 0.0
    %461 = vmatpush.msra.mxu0 0.0
    %462 = vmatpush.msra.mxu0 0.0
    %463 = vmatpush.msra.mxu0 0.0
    %464 = vmatpush.msra.mxu0 0.0
    %465 = vmatpush.msra.mxu0 0.0
    %466 = vmatpush.msra.mxu0 0.0
    %467 = vmatpush.msra.mxu0 0.0
    %468 = vmatpush.msra.mxu0 0.0
    %469 = vmatpush.msra.mxu0 %v452
    %470 = vmatmul.f32.gmra.mxu0 %v446
    %v471 = vpop.f32.mrf.mxu0
    %v472 = vadd.f32 0.0, %v471
    %473 = vmatmul.f32.gmra.mxu0 %v449
    %v474 = vpop.f32.mrf.mxu0
    %v475 = vadd.f32 0.0, %v474
    %476 = vdwg.mxu0
    %s477 = scalar_lea.vmem [#allocation10], 8
    %v478 = vld [vmem:[%s477] sm:$0xf]
    %v480 = vsel %vm322, %v434, 0
    %v483 = vsel %vm322, %v435, 0
    %v486 = vsel %vm329, %v442, 0
    %488 = vmatpush.msra.mxu0 0.0
    %489 = vmatpush.msra.mxu0 0.0
    %490 = vmatpush.msra.mxu0 0.0
    %491 = vmatpush.msra.mxu0 0.0
    %492 = vmatpush.msra.mxu0 0.0
    %493 = vmatpush.msra.mxu0 0.0
    %494 = vmatpush.msra.mxu0 0.0
    %495 = vmatpush.msra.mxu0 0.0
    %496 = vmatpush.msra.mxu0 0.0
    %497 = vmatpush.msra.mxu0 0.0
    %498 = vmatpush.msra.mxu0 0.0
    %499 = vmatpush.msra.mxu0 0.0
    %500 = vmatpush.msra.mxu0 0.0
    %501 = vmatpush.msra.mxu0 0.0
    %502 = vmatpush.msra.mxu0 0.0
    %503 = vmatpush.msra.mxu0 %v486
    %504 = vmatmul.f32.gmra.mxu0 %v480
    %v505 = vpop.f32.mrf.mxu0
    %v506 = vadd.f32 %v472, %v505
    %507 = vmatmul.f32.gmra.mxu0 %v483
    %v508 = vpop.f32.mrf.mxu0
    %v509 = vadd.f32 %v475, %v508
    %510 = vdwg.mxu0
    %v511 = vld [vmem:[#allocation12] sm:$0x1]
    %v513 = vperm.slane %v511, 0
    %v516 = vsel %vm322, %v440, 0
    %v519 = vsel %vm322, %v441, 0
    %v522 = vsel %vm329, %v478, 0
    %524 = vmatpush.msra.mxu0 0.0
    %525 = vmatpush.msra.mxu0 0.0
    %526 = vmatpush.msra.mxu0 0.0
    %527 = vmatpush.msra.mxu0 0.0
    %528 = vmatpush.msra.mxu0 0.0
    %529 = vmatpush.msra.mxu0 0.0
    %530 = vmatpush.msra.mxu0 0.0
    %531 = vmatpush.msra.mxu0 0.0
    %532 = vmatpush.msra.mxu0 0.0
    %533 = vmatpush.msra.mxu0 0.0
    %534 = vmatpush.msra.mxu0 0.0
    %535 = vmatpush.msra.mxu0 0.0
    %536 = vmatpush.msra.mxu0 0.0
    %537 = vmatpush.msra.mxu0 0.0
    %538 = vmatpush.msra.mxu0 0.0
    %539 = vmatpush.msra.mxu0 %v522
    %540 = vmatmul.f32.gmra.mxu0 %v516
    %v541 = vpop.f32.mrf.mxu0
    %v542 = vadd.f32 %v513, %v541
    %543 = vmatmul.f32.gmra.mxu0 %v519
    %v544 = vpop.f32.mrf.mxu0
    %v545 = vadd.f32 %v513, %v544
    %546 = vdwg.mxu0
    %v547 = vadd.f32 %v506, %v542
    %v548 = vadd.f32 %v509, %v545
    %v549 = vmax.f32 %v547, 0.0
    %v550 = vmax.f32 %v548, 0.0
    %v551 = vadd.f32 %v303, %v549
    %v552 = vadd.f32 %v304, %v550
    %v553 = vrot.slane %v551, 7
    %v554 = vrot.slane %v552, 7
    %v555 = vsel %vm307, %v553, %v554
    %v556 = vsel %vm307, %v554, %v553
    %v557 = vmul.f32 %v556, %v222
    %v558 = vmul.f32 %v555, %v223
    %v559 = vrot.slane %v551, 1
    %v560 = vrot.slane %v552, 1
    %v561 = vsel %vm314, %v559, %v560
    %v562 = vsel %vm314, %v560, %v559
    %v563 = vmul.f32 %v561, %v226
    %v564 = vmul.f32 %v562, %v227
    %v565 = vld [vmem:[#allocation13] sm:$0xf]
    %s566 = scalar_lea.vmem [#allocation13], 4
    %v567 = vld [vmem:[%s566] sm:$0xf]
    %v569 = vsel %vm322, %v551, 0
    %v572 = vsel %vm322, %v552, 0
    %v575 = vsel %vm329, %v567, 0
    %577 = vmatpush.msra.mxu0 0.0
    %578 = vmatpush.msra.mxu0 0.0
    %579 = vmatpush.msra.mxu0 0.0
    %580 = vmatpush.msra.mxu0 0.0
    %581 = vmatpush.msra.mxu0 0.0
    %582 = vmatpush.msra.mxu0 0.0
    %583 = vmatpush.msra.mxu0 0.0
    %584 = vmatpush.msra.mxu0 0.0
    %585 = vmatpush.msra.mxu0 0.0
    %586 = vmatpush.msra.mxu0 0.0
    %587 = vmatpush.msra.mxu0 0.0
    %588 = vmatpush.msra.mxu0 0.0
    %589 = vmatpush.msra.mxu0 0.0
    %590 = vmatpush.msra.mxu0 0.0
    %591 = vmatpush.msra.mxu0 0.0
    %592 = vmatpush.msra.mxu0 %v575
    %593 = vmatmul.f32.gmra.mxu0 %v569
    %v594 = vpop.f32.mrf.mxu0
    %v595 = vadd.f32 0.0, %v594
    %596 = vmatmul.f32.gmra.mxu0 %v572
    %v597 = vpop.f32.mrf.mxu0
    %v598 = vadd.f32 0.0, %v597
    %599 = vdwg.mxu0
    %s600 = scalar_lea.vmem [#allocation13], 8
    %v601 = vld [vmem:[%s600] sm:$0xf]
    %v603 = vsel %vm322, %v557, 0
    %v606 = vsel %vm322, %v558, 0
    %v609 = vsel %vm329, %v565, 0
    %611 = vmatpush.msra.mxu0 0.0
    %612 = vmatpush.msra.mxu0 0.0
    %613 = vmatpush.msra.mxu0 0.0
    %614 = vmatpush.msra.mxu0 0.0
    %615 = vmatpush.msra.mxu0 0.0
    %616 = vmatpush.msra.mxu0 0.0
    %617 = vmatpush.msra.mxu0 0.0
    %618 = vmatpush.msra.mxu0 0.0
    %619 = vmatpush.msra.mxu0 0.0
    %620 = vmatpush.msra.mxu0 0.0
    %621 = vmatpush.msra.mxu0 0.0
    %622 = vmatpush.msra.mxu0 0.0
    %623 = vmatpush.msra.mxu0 0.0
    %624 = vmatpush.msra.mxu0 0.0
    %625 = vmatpush.msra.mxu0 0.0
    %626 = vmatpush.msra.mxu0 %v609
    %627 = vmatmul.f32.gmra.mxu0 %v603
    %v628 = vpop.f32.mrf.mxu0
    %v629 = vadd.f32 %v595, %v628
    %630 = vmatmul.f32.gmra.mxu0 %v606
    %v631 = vpop.f32.mrf.mxu0
    %v632 = vadd.f32 %v598, %v631
    %633 = vdwg.mxu0
    %v634 = vld [vmem:[#allocation15] sm:$0x1]
    %v636 = vperm.slane %v634, 0
    %v639 = vsel %vm322, %v563, 0
    %v642 = vsel %vm322, %v564, 0
    %v645 = vsel %vm329, %v601, 0
    %647 = vmatpush.msra.mxu0 0.0
    %648 = vmatpush.msra.mxu0 0.0
    %649 = vmatpush.msra.mxu0 0.0
    %650 = vmatpush.msra.mxu0 0.0
    %651 = vmatpush.msra.mxu0 0.0
    %652 = vmatpush.msra.mxu0 0.0
    %653 = vmatpush.msra.mxu0 0.0
    %654 = vmatpush.msra.mxu0 0.0
    %655 = vmatpush.msra.mxu0 0.0
    %656 = vmatpush.msra.mxu0 0.0
    %657 = vmatpush.msra.mxu0 0.0
    %658 = vmatpush.msra.mxu0 0.0
    %659 = vmatpush.msra.mxu0 0.0
    %660 = vmatpush.msra.mxu0 0.0
    %661 = vmatpush.msra.mxu0 0.0
    %662 = vmatpush.msra.mxu0 %v645
    %663 = vmatmul.f32.gmra.mxu0 %v639
    %v664 = vpop.f32.mrf.mxu0
    %v665 = vadd.f32 %v636, %v664
    %666 = vmatmul.f32.gmra.mxu0 %v642
    %v667 = vpop.f32.mrf.mxu0
    %v668 = vadd.f32 %v636, %v667
    %669 = vdwg.mxu0
    %v670 = vadd.f32 %v629, %v665
    %v671 = vadd.f32 %v632, %v668
    %v672 = vmax.f32 %v670, 0.0
    %v673 = vmax.f32 %v671, 0.0
    %v674 = vrot.slane %v672, 7
    %v675 = vrot.slane %v673, 7
    %v676 = vsel %vm307, %v674, %v675
    %v677 = vsel %vm307, %v675, %v674
    %v678 = vmul.f32 %v677, %v222
    %v679 = vmul.f32 %v676, %v223
    %v680 = vrot.slane %v672, 1
    %v681 = vrot.slane %v673, 1
    %v682 = vsel %vm314, %v680, %v681
    %v683 = vsel %vm314, %v681, %v680
    %v684 = vmul.f32 %v682, %v226
    %v685 = vmul.f32 %v683, %v227
    %v686 = vld [vmem:[#allocation16] sm:$0xf]
    %s687 = scalar_lea.vmem [#allocation16], 4
    %v688 = vld [vmem:[%s687] sm:$0xf]
    %v690 = vsel %vm322, %v672, 0
    %v693 = vsel %vm322, %v673, 0
    %v696 = vsel %vm329, %v688, 0
    %698 = vmatpush.msra.mxu0 0.0
    %699 = vmatpush.msra.mxu0 0.0
    %700 = vmatpush.msra.mxu0 0.0
    %701 = vmatpush.msra.mxu0 0.0
    %702 = vmatpush.msra.mxu0 0.0
    %703 = vmatpush.msra.mxu0 0.0
    %704 = vmatpush.msra.mxu0 0.0
    %705 = vmatpush.msra.mxu0 0.0
    %706 = vmatpush.msra.mxu0 0.0
    %707 = vmatpush.msra.mxu0 0.0
    %708 = vmatpush.msra.mxu0 0.0
    %709 = vmatpush.msra.mxu0 0.0
    %710 = vmatpush.msra.mxu0 0.0
    %711 = vmatpush.msra.mxu0 0.0
    %712 = vmatpush.msra.mxu0 0.0
    %713 = vmatpush.msra.mxu0 %v696
    %714 = vmatmul.f32.gmra.mxu0 %v690
    %v715 = vpop.f32.mrf.mxu0
    %v716 = vadd.f32 0.0, %v715
    %717 = vmatmul.f32.gmra.mxu0 %v693
    %v718 = vpop.f32.mrf.mxu0
    %v719 = vadd.f32 0.0, %v718
    %720 = vdwg.mxu0
    %s721 = scalar_lea.vmem [#allocation16], 8
    %v722 = vld [vmem:[%s721] sm:$0xf]
    %v724 = vsel %vm322, %v678, 0
    %v727 = vsel %vm322, %v679, 0
    %v730 = vsel %vm329, %v686, 0
    %732 = vmatpush.msra.mxu0 0.0
    %733 = vmatpush.msra.mxu0 0.0
    %734 = vmatpush.msra.mxu0 0.0
    %735 = vmatpush.msra.mxu0 0.0
    %736 = vmatpush.msra.mxu0 0.0
    %737 = vmatpush.msra.mxu0 0.0
    %738 = vmatpush.msra.mxu0 0.0
    %739 = vmatpush.msra.mxu0 0.0
    %740 = vmatpush.msra.mxu0 0.0
    %741 = vmatpush.msra.mxu0 0.0
    %742 = vmatpush.msra.mxu0 0.0
    %743 = vmatpush.msra.mxu0 0.0
    %744 = vmatpush.msra.mxu0 0.0
    %745 = vmatpush.msra.mxu0 0.0
    %746 = vmatpush.msra.mxu0 0.0
    %747 = vmatpush.msra.mxu0 %v730
    %748 = vmatmul.f32.gmra.mxu0 %v724
    %v749 = vpop.f32.mrf.mxu0
    %v750 = vadd.f32 %v716, %v749
    %751 = vmatmul.f32.gmra.mxu0 %v727
    %v752 = vpop.f32.mrf.mxu0
    %v753 = vadd.f32 %v719, %v752
    %754 = vdwg.mxu0
    %v755 = vld [vmem:[#allocation18] sm:$0x1]
    %v757 = vperm.slane %v755, 0
    %v760 = vsel %vm322, %v684, 0
    %v763 = vsel %vm322, %v685, 0
    %v766 = vsel %vm329, %v722, 0
    %768 = vmatpush.msra.mxu0 0.0
    %769 = vmatpush.msra.mxu0 0.0
    %770 = vmatpush.msra.mxu0 0.0
    %771 = vmatpush.msra.mxu0 0.0
    %772 = vmatpush.msra.mxu0 0.0
    %773 = vmatpush.msra.mxu0 0.0
    %774 = vmatpush.msra.mxu0 0.0
    %775 = vmatpush.msra.mxu0 0.0
    %776 = vmatpush.msra.mxu0 0.0
    %777 = vmatpush.msra.mxu0 0.0
    %778 = vmatpush.msra.mxu0 0.0
    %779 = vmatpush.msra.mxu0 0.0
    %780 = vmatpush.msra.mxu0 0.0
    %781 = vmatpush.msra.mxu0 0.0
    %782 = vmatpush.msra.mxu0 0.0
    %783 = vmatpush.msra.mxu0 %v766
    %784 = vmatmul.f32.gmra.mxu0 %v760
    %v785 = vpop.f32.mrf.mxu0
    %v786 = vadd.f32 %v757, %v785
    %787 = vmatmul.f32.gmra.mxu0 %v763
    %v788 = vpop.f32.mrf.mxu0
    %v789 = vadd.f32 %v757, %v788
    %790 = vdwg.mxu0
    %v791 = vadd.f32 %v750, %v786
    %v792 = vadd.f32 %v753, %v789
    %v793 = vmax.f32 %v791, 0.0
    %v794 = vmax.f32 %v792, 0.0
    %v795 = vadd.f32 %v551, %v793
    %v796 = vadd.f32 %v552, %v794
    %797 = vst.msk [vmem:[#allocation2] sm:$0xff] %vm322, %v795
    %798 = vst.msk [vmem:[#allocation2 + $0x8] sm:$0xff] %vm322, %v796
    %v799 = vld [vmem:[#allocation2] ss:$2 sm:$0xff]
    %s800 = scalar_lea.vmem [#allocation2], 1
    %v801 = vld [vmem:[%s800] ss:$2 sm:$0xff]
    %v802 = vmax.f32 %v799, %v801
    %803 = vst.msk [vmem:[#allocation3] sm:$0xff] %vm322, %v802
    %v804 = vld [vmem:[#allocation3] ss:$4 sm:$0x3]
    %v805 = vld [vmem:[#allocation19] sm:$0xf]
    %s806 = scalar_lea.vmem [#allocation3], 1
    %v807 = vld [vmem:[%s806] ss:$4 sm:$0x3]
    %s808 = scalar_lea.vmem [#allocation19], 4
    %v809 = vld [vmem:[%s808] sm:$0xf]
    %v811 = vsel %vm322, %v807, 0
    %v814 = vsel %vm329, %v809, 0
    %816 = vmatpush.msra.mxu0 0.0
    %817 = vmatpush.msra.mxu0 0.0
    %818 = vmatpush.msra.mxu0 0.0
    %819 = vmatpush.msra.mxu0 0.0
    %820 = vmatpush.msra.mxu0 0.0
    %821 = vmatpush.msra.mxu0 0.0
    %822 = vmatpush.msra.mxu0 0.0
    %823 = vmatpush.msra.mxu0 0.0
    %824 = vmatpush.msra.mxu0 0.0
    %825 = vmatpush.msra.mxu0 0.0
    %826 = vmatpush.msra.mxu0 0.0
    %827 = vmatpush.msra.mxu0 0.0
    %828 = vmatpush.msra.mxu0 0.0
    %829 = vmatpush.msra.mxu0 0.0
    %830 = vmatpush.msra.mxu0 0.0
    %831 = vmatpush.msra.mxu0 %v814
    %832 = vmatmul.f32.gmra.mxu0 %v811
    %v833 = vpop.f32.mrf.mxu0
    %v834 = vadd.f32 0.0, %v833
    %835 = vdwg.mxu0
    %s836 = scalar_lea.vmem [#allocation3], 2
    %v837 = vld [vmem:[%s836] ss:$4 sm:$0x3]
    %s838 = scalar_lea.vmem [#allocation19], 8
    %v839 = vld [vmem:[%s838] sm:$0xf]
    %s840 = scalar_lea.vmem [#allocation3], 3
    %v841 = vld [vmem:[%s840] ss:$4 sm:$0x3]
    %s842 = scalar_lea.vmem [#allocation19], 12
    %v843 = vld [vmem:[%s842] sm:$0xf]
    %v845 = vsel %vm322, %v841, 0
    %v848 = vsel %vm329, %v843, 0
    %850 = vmatpush.msra.mxu0 0.0
    %851 = vmatpush.msra.mxu0 0.0
    %852 = vmatpush.msra.mxu0 0.0
    %853 = vmatpush.msra.mxu0 0.0
    %854 = vmatpush.msra.mxu0 0.0
    %855 = vmatpush.msra.mxu0 0.0
    %856 = vmatpush.msra.mxu0 0.0
    %857 = vmatpush.msra.mxu0 0.0
    %858 = vmatpush.msra.mxu0 0.0
    %859 = vmatpush.msra.mxu0 0.0
    %860 = vmatpush.msra.mxu0 0.0
    %861 = vmatpush.msra.mxu0 0.0
    %862 = vmatpush.msra.mxu0 0.0
    %863 = vmatpush.msra.mxu0 0.0
    %864 = vmatpush.msra.mxu0 0.0
    %865 = vmatpush.msra.mxu0 %v848
    %866 = vmatmul.f32.gmra.mxu0 %v845
    %v867 = vpop.f32.mrf.mxu0
    %v868 = vadd.f32 0.0, %v867
    %869 = vdwg.mxu0
    %v870 = vld [vmem:[#allocation21] sm:$0x1]
    %v872 = vsel %vm322, %v804, 0
    %v875 = vsel %vm329, %v805, 0
    %877 = vmatpush.msra.mxu0 0.0
    %878 = vmatpush.msra.mxu0 0.0
    %879 = vmatpush.msra.mxu0 0.0
    %880 = vmatpush.msra.mxu0 0.0
    %881 = vmatpush.msra.mxu0 0.0
    %882 = vmatpush.msra.mxu0 0.0
    %883 = vmatpush.msra.mxu0 0.0
    %884 = vmatpush.msra.mxu0 0.0
    %885 = vmatpush.msra.mxu0 0.0
    %886 = vmatpush.msra.mxu0 0.0
    %887 = vmatpush.msra.mxu0 0.0
    %888 = vmatpush.msra.mxu0 0.0
    %889 = vmatpush.msra.mxu0 0.0
    %890 = vmatpush.msra.mxu0 0.0
    %891 = vmatpush.msra.mxu0 0.0
    %892 = vmatpush.msra.mxu0 %v875
    %893 = vmatmul.f32.gmra.mxu0 %v872
    %v894 = vpop.f32.mrf.mxu0
    %v895 = vadd.f32 %v834, %v894
    %896 = vdwg.mxu0
    %v898 = vsel %vm322, %v837, 0
    %v901 = vsel %vm329, %v839, 0
    %903 = vmatpush.msra.mxu0 0.0
    %904 = vmatpush.msra.mxu0 0.0
    %905 = vmatpush.msra.mxu0 0.0
    %906 = vmatpush.msra.mxu0 0.0
    %907 = vmatpush.msra.mxu0 0.0
    %908 = vmatpush.msra.mxu0 0.0
    %909 = vmatpush.msra.mxu0 0.0
    %910 = vmatpush.msra.mxu0 0.0
    %911 = vmatpush.msra.mxu0 0.0
    %912 = vmatpush.msra.mxu0 0.0
    %913 = vmatpush.msra.mxu0 0.0
    %914 = vmatpush.msra.mxu0 0.0
    %915 = vmatpush.msra.mxu0 0.0
    %916 = vmatpush.msra.mxu0 0.0
    %917 = vmatpush.msra.mxu0 0.0
    %918 = vmatpush.msra.mxu0 %v901
    %919 = vmatmul.f32.gmra.mxu0 %v898
    %v920 = vpop.f32.mrf.mxu0
    %v921 = vadd.f32 %v868, %v920
    %922 = vdwg.mxu0
    %v923 = vadd.f32 %v895, %v921
    %v925 = vperm.slane %v870, 0
    %v927 = vadd.f32 %v925, %v923
    %v928 = vmul.f32 %v927, 0.5
    %v929 = vmul.f32 %v927, 0.70710677
    %vm930 = vcmp.ge.f32.partialorder %v929, 0.0
    %v931 = vsel %vm930, 1.0, -1.0
    %v932 = vand.u32 2147483647, %v929
    %v933 = vmul.f32 %v932, 0.3275911
    %v934 = vadd.f32 %v933, 1.0
    %v935 = vrcp.pop %v934
    %v936 = vmul.f32 %v934, %v935
    %v937 = vsub.f32 1.0, %v936
    %v938 = vmul.f32 %v935, %v937
    %v939 = vadd.f32 %v935, %v938
    %vm940 = vweird.f32 %v934
    %vm941 = vweird.f32 %v935
    %vm942 = vmor %vm940, %vm941
    %v943 = vsel %vm942, %v935, %v939
    %v944 = vand.u32 2147483647, %v934
    %vm945 = vcmp.eq.f32.partialorder %v944, 8.507059e+37
    %v946 = vand.u32 %v934, 2147483648
    %v947 = vor.u32 1.1754944e-38, %v946
    %v948 = vsel %vm945, %v947, %v943
    %v949 = vmul.f32 1.0, %v948
    %v950 = vmul.f32 %v949, 1.0614054
    %v951 = vadd.f32 %v950, -1.4531521
    %v952 = vmul.f32 %v951, %v949
    %v953 = vadd.f32 %v952, 1.4214138
    %v954 = vmul.f32 %v953, %v949
    %v955 = vadd.f32 %v954, -0.28449672
    %v956 = vmul.f32 %v955, %v949
    %v957 = vadd.f32 %v956, 0.2548296
    %v958 = vmul.f32 %v957, %v949
    %v959 = vsub.f32 0.0, %v932
    %v960 = vmul.f32 %v959, %v932
    %v961 = vmul.f32 %v960, 1.442695
    %v962 = vpow.pop %v961
    %v963 = vmul.f32 %v958, %v962
    %v964 = vsub.f32 1.0, %v963
    %v965 = vmul.f32 %v931, %v964
    %v966 = vadd.f32 %v965, 1.0
    %v967 = vmul.f32 %v928, %v966
    %v968 = vld [vmem:[%s14] sm:$0xff]
    %v969 = vld [vmem:[%s14 + $0x8] sm:$0xff]
    %v970 = vld [vmem:[%s14 + $0x10] sm:$0xff]
    %v971 = vld [vmem:[%s14 + $0x18] sm:$0xff]
    %v972 = vld [vmem:[%s15] sm:$0x1]
    %v974 = vperm.slane %v972, 0
    %v977 = vsel %vm238, %v967, 0
    %979 = vmatpush.msra.mxu0 0.0
    %980 = vmatpush.msra.mxu0 0.0
    %981 = vmatpush.msra.mxu0 0.0
    %982 = vmatpush.msra.mxu0 0.0
    %983 = vmatpush.msra.mxu0 0.0
    %984 = vmatpush.msra.mxu0 0.0
    %985 = vmatpush.msra.mxu0 0.0
    %986 = vmatpush.msra.mxu0 0.0
    %987 = vmatpush.msra.mxu0 0.0
    %988 = vmatpush.msra.mxu0 0.0
    %989 = vmatpush.msra.mxu0 0.0
    %990 = vmatpush.msra.mxu0 0.0
    %991 = vmatpush.msra.mxu0 %v971
    %992 = vmatpush.msra.mxu0 %v970
    %993 = vmatpush.msra.mxu0 %v969
    %994 = vmatpush.msra.mxu0 %v968
    %995 = vmatmul.f32.gmra.mxu0 %v977
    %v996 = vpop.f32.mrf.mxu0
    %v997 = vadd.f32 %v974, %v996
    %998 = vdwg.mxu0
    %999 = vst [vmem:[#allocation22] sm:$0x3] %v997
    // Predicated region
    $region110: #{tpu_custom_call.1} parent=1 // pred_check
      _
    $region111: #{tpu_custom_call.1} parent=1 // pred_check_branch
      %1001 = sbr.rel (0) target = $region113
    $region112: #{tpu_custom_call.1} parent=1 // pred_region
      %1003 = vsyncadd [#allocation6], 0
      %s1005 = sshll.u32 [#allocation22], 4
      %s1006 = int_to_ptr.vmem [resolvable:$true] %s1005
      %s1007 = sshll.u32 %s16, 4
      %s1008 = int_to_ptr.hbm [resolvable:$true] %s1007
      %1010 = dma.vmem_to_hbm [thread:$0]  %s1006, 32, %s1008, [#allocation6]
    $region113: #{tpu_custom_call.1} parent=1 // pred_fallthru
      _
    // Predicated region
    $region114: #{tpu_custom_call.1} parent=1 // pred_check
      _
    $region115: #{tpu_custom_call.1} parent=1 // pred_check_branch
      %1012 = sbr.rel (0) target = $region117
    $region116: #{tpu_custom_call.1} parent=1 // pred_region
      %1014 = dma.done [#allocation6], 32
    $region117: #{tpu_custom_call.1} parent=1 // pred_fallthru
      _
    %1015 = vsyncpa [#allocation5], 1
    %1016 = vsyncpa [#allocation8], 1
    %1017 = vsyncpa [#allocation11], 1
    %1018 = vsyncpa [#allocation14], 1
    %1019 = vsyncpa [#allocation17], 1
    %1020 = vsyncpa [#allocation20], 1
    %1021 = vsyncpa [#allocation6], 1

</llo_original>
